<compile_context>
chip_gen: v5e
topology: v5e:2x2
jax: 0.10.0
libtpu: 0.0.40
codegen_flags: <defaults>
</compile_context>

<pallas_src>
import functools

import jax
import jax.numpy as jnp
import numpy as np
from jax import lax
from jax.experimental import pallas as pl
from jax.experimental.pallas import tpu as pltpu

_LANE = 128
_SUB = 8
_NEG_INF = -1e30  # masked energies; exp() underflows to exactly 0


def _round_up(v, m):
    return (v + m - 1) // m * m


def _bmm(a, b, ca, cb):
    """Batched matmul (leading batch dim on both operands), fp32 accumulation."""
    return lax.dot_general(
        a, b, dimension_numbers=(((ca,), (cb,)), ((0,), (0,))),
        preferred_element_type=jnp.float32)


def _t2d(a, eye):
    """Transpose a small 2-D fp32 stats matrix via an identity matmul (MXU).

    eye must be jnp.eye(a.shape[1]); out[j, i] = sum_k eye[j, k] * a[i, k].
    Avoids relying on XLU transpose lowering for tiny, non-tile-aligned shapes.
    """
    return lax.dot_general(eye, a, dimension_numbers=(((1,), (1,)), ((), ())),
                           preferred_element_type=jnp.float32)


def cca_attn_kernel(q_ref, k_ref, v_ref, qt_ref, kt_ref, vt_ref,
                    o_row_ref, o_colt_ref, *, tile_h, h_valid, w_valid,
                    mxu_dtype, approx_recip):
    """Criss-cross attention for one (batch, query-row-tile) grid step.

    q_ref / k_ref / v_ref : (1, TH, Wp, Cqp|Cp)  row-major query-row tile
    qt_ref                : (1, Wp, TH, Cqp)     W-major query tile
    kt_ref / vt_ref       : (1, Wp, Hp, Cqp|Cp)  W-major, full H (resident)
    o_row_ref             : (1, TH, Wp, Cp)      row-branch partial output
    o_colt_ref            : (1, Wp, TH, Cp)      column-branch partial (W-major)
    """
    q = q_ref[0]
    k = k_ref[0]
    v = v_ref[0]
    qt = qt_ref[0]
    kt = kt_ref[0]
    vt = vt_ref[0]
    wp = q.shape[1]
    hp = kt.shape[1]
    y0 = pl.program_id(1) * tile_h

    # --- criss-cross energies (bf16 operands, fp32 accumulation on the MXU) --
    # row branch   : e_row[y, x, i]  = <q(y, x), k(y, i)>     -> (TH, Wp, Wp)
    e_row = _bmm(q, k, 2, 2)
    # column branch: e_colt[x, y, j] = <q(y, x), k(j, x)>     -> (Wp, TH, Hp)
    e_colt = _bmm(qt, kt, 2, 2)

    # Mask padded row keys (i >= W) with one tiny (1, 1, Wp) mask.
    if wp > w_valid:
        i_id = lax.broadcasted_iota(jnp.int32, (1, 1, wp), 2)
        e_row = jnp.where(i_id >= w_valid, _NEG_INF, e_row)
    # Mask the column self term (already counted once by the row branch) and
    # padded column keys (j >= H) with ONE (1, TH, Hp) mask broadcast over W.
    j_id = lax.broadcasted_iota(jnp.int32, (1, tile_h, hp), 2)
    y_id = lax.broadcasted_iota(jnp.int32, (1, tile_h, hp), 1) + y0
    col_mask = j_id == y_id
    if hp > h_valid:
        col_mask = jnp.logical_or(col_mask, j_id >= h_valid)
    e_colt = jnp.where(col_mask, _NEG_INF, e_colt)

    # --- joint softmax over the H + W - 1 criss-cross neighbours (fp32) ------
    eye_t = jnp.eye(tile_h, dtype=jnp.float32)
    eye_w = jnp.eye(wp, dtype=jnp.float32)
    m_row = jnp.max(e_row, axis=2)                           # (TH, Wp)
    m_colt = jnp.max(e_colt, axis=2)                         # (Wp, TH)
    m = jnp.maximum(m_row, _t2d(m_colt, eye_t))              # (TH, Wp)
    mt = _t2d(m, eye_w)                                      # (Wp, TH)
    p_row = jnp.exp(e_row - m[:, :, None])
    p_colt = jnp.exp(e_colt - mt[:, :, None])
    denom = jnp.sum(p_row, axis=2) + _t2d(jnp.sum(p_colt, axis=2), eye_t)
    inv = pl.reciprocal(denom, approx=approx_recip)          # (TH, Wp), EUP slot
    invt = _t2d(inv, eye_w)                                  # (Wp, TH)

    # --- aggregate values; normalisation deferred to the small outputs -------
    out_row = _bmm(p_row.astype(mxu_dtype), v, 2, 1) * inv[:, :, None]
    out_colt = _bmm(p_colt.astype(mxu_dtype), vt, 2, 1) * invt[:, :, None]

    o_row_ref[0] = out_row.astype(o_row_ref.dtype)
    o_colt_ref[0] = out_colt.astype(o_colt_ref.dtype)


def _choose_tile_and_vmem(H, W, cqp, cp, in_bytes, out_bytes):
    """Pick the query-row tile and a generation-aware vmem limit."""
    wp = _round_up(W, _SUB)
    try:
        cap = int(getattr(pltpu.get_tpu_info(), "vmem_capacity_bytes", 64 << 20))
    except Exception:  # conservative fallback: size for a 64 MiB-VMEM part
        cap = 64 << 20
    budget = (56 << 20) if cap <= (64 << 20) else (100 << 20)

    best = None
    for th in (32, 16, 8):
        if th > _round_up(H, _SUB):
            continue
        hp = _round_up(H, th)
        # Pallas double-buffers every input/output block.
        io = 2 * ((2 * th * wp * cqp          # q, k row tiles
                   + th * wp * cp             # v row tile
                   + wp * th * cqp            # qT tile
                   + wp * hp * (cqp + cp)     # kT / vT (full H, resident)
                   ) * in_bytes
                  + (th * wp * cp + wp * th * cp) * out_bytes)
        tmp = 4 * 4 * (th * wp * wp + wp * th * hp)   # e/p fp32 temps (+ slack)
        need = io + tmp + (4 << 20)
        key = (need > budget, hp, -th)                # fit, least padding, big tile
        if best is None or key < best[0]:
            best = (key, th, hp, need)
    _, th, hp, need = best
    vmem_limit = int(min(max(need, 32 << 20), budget))
    return th, hp, wp, vmem_limit


def cca_forward(x_nchw, wq, bq, wk, bk, wv, bv, gamma, *,
                mxu_dtype=jnp.bfloat16, approx_recip=True):
    """CrissCrossAttention forward.

    x_nchw: (B, C, H, W); wq/wk: (C//8, C); wv: (C, C); 1-D biases; gamma: (1,).
    Returns (B, C, H, W).
    """
    B, C, H, W = x_nchw.shape
    cq = wq.shape[0]
    cp = _round_up(C, _LANE)
    cqp = _round_up(cq, _LANE)
    f32 = jnp.float32
    mxu_dtype = jnp.dtype(mxu_dtype)
    out_dtype = mxu_dtype  # partial outputs; combined in fp32 below

    th, hp, wp, vmem_limit = _choose_tile_and_vmem(
        H, W, cqp, cp, mxu_dtype.itemsize, jnp.dtype(out_dtype).itemsize)

    # --- fused 1x1 q/k/v projection, done exactly once (plain XLA matmul) ----
    x_hwc = jnp.transpose(x_nchw, (0, 2, 3, 1)).astype(f32)            # (B,H,W,C)
    w_all = jnp.concatenate([wq.T, wk.T, wv.T], axis=1).astype(f32)    # (C, 2Cq+C)
    b_all = jnp.concatenate([bq, bk, bv]).astype(f32)
    proj = jnp.einsum('bhwc,cd->bhwd', x_hwc, w_all) + b_all
    q, k, v = proj[..., :cq], proj[..., cq:2 * cq], proj[..., 2 * cq:]

    # Pad spatially to (Hp, Wp), pad channels to lane multiples, and cast the
    # MXU operands to bf16 once here (not per grid step inside the kernel).
    def prep(a, c_to):
        a = jnp.pad(a, ((0, 0), (0, hp - H), (0, wp - W), (0, c_to - a.shape[-1])))
        return a.astype(mxu_dtype)

    qp, kp, vp = prep(q, cqp), prep(k, cqp), prep(v, cp)
    # W-major twins for the column branch: one-time HBM transposes, so the
    # kernel never re-projects v and never needs an in-kernel 3-D transpose.
    qt = jnp.transpose(qp, (0, 2, 1, 3))
    kt = jnp.transpose(kp, (0, 2, 1, 3))
    vt = jnp.transpose(vp, (0, 2, 1, 3))

    nt = hp // th
    kernel = functools.partial(cca_attn_kernel, tile_h=th, h_valid=H,
                               w_valid=W, mxu_dtype=mxu_dtype,
                               approx_recip=approx_recip)
    o_row, o_colt = pl.pallas_call(
        kernel,
        out_shape=(jax.ShapeDtypeStruct((B, hp, wp, cp), out_dtype),
                   jax.ShapeDtypeStruct((B, wp, hp, cp), out_dtype)),
        grid=(B, nt),
        in_specs=[
            pl.BlockSpec((1, th, wp, cqp), lambda b, t: (b, t, 0, 0)),   # q tile
            pl.BlockSpec((1, th, wp, cqp), lambda b, t: (b, t, 0, 0)),   # k tile
            pl.BlockSpec((1, th, wp, cp), lambda b, t: (b, t, 0, 0)),    # v tile
            pl.BlockSpec((1, wp, th, cqp), lambda b, t: (b, 0, t, 0)),   # qT tile
            pl.BlockSpec((1, wp, hp, cqp), lambda b, t: (b, 0, 0, 0)),   # kT (full H)
            pl.BlockSpec((1, wp, hp, cp), lambda b, t: (b, 0, 0, 0)),    # vT (full H)
        ],
        out_specs=(
            pl.BlockSpec((1, th, wp, cp), lambda b, t: (b, t, 0, 0)),
            pl.BlockSpec((1, wp, th, cp), lambda b, t: (b, 0, t, 0)),
        ),
        compiler_params=pltpu.CompilerParams(
            dimension_semantics=("parallel", "parallel"),
            vmem_limit_bytes=vmem_limit),
    )(qp, kp, vp, qt, kt, vt)

    # Fold the W-major column contribution back in, drop the padding, and apply
    # gamma + residual (cheap elementwise work XLA fuses with the transposes).
    out = o_row.astype(f32) + jnp.transpose(o_colt, (0, 2, 1, 3)).astype(f32)
    out = out[:, :H, :W, :C]
    out = gamma.astype(f32)[0] * out + x_hwc
    return jnp.transpose(out, (0, 3, 1, 2)).astype(x_nchw.dtype)


def cca_ref(x, wq, bq, wk, bk, wv, bv, gamma):
    """Pure-JAX replica of the PyTorch CrissCrossAttention forward (NCHW)."""
    B, C, H, W = x.shape

    def conv1x1(w, b):
        return jnp.einsum('oc,bchw->bohw', w, x) + b[None, :, None, None]

    t = conv1x1(wq, bq)                               # proj_query (B, Cq, H, W)
    f = conv1x1(wk, bk)                               # proj_key   (B, Cq, H, W)
    g = conv1x1(wv, bv)                               # proj_value (B, C,  H, W)

    # ca_weight: row energies (incl. self) + column energies (excl. self)
    e_row = jnp.einsum('bcyx,bcyi->byxi', t, f)       # (B, H, W, W)
    e_col = jnp.einsum('bcyx,bcix->byxi', t, f)       # (B, H, W, H)
    self_mask = jnp.arange(H)[:, None, None] == jnp.arange(H)[None, None, :]
    e_col = jnp.where(self_mask[None], _NEG_INF, e_col)

    energy = jnp.concatenate([e_row, e_col], axis=-1)  # (B, H, W, W + H)
    attn = jax.nn.softmax(energy, axis=-1)             # == F.softmax(energy, 1)
    a_row, a_col = attn[..., :W], attn[..., W:]

    # ca_map: aggregate values along the criss-cross paths
    out = (jnp.einsum('byxi,bcyi->bcyx', a_row, g)
           + jnp.einsum('byxi,bcix->bcyx', a_col, g))
    return gamma[0] * out + x


if __name__ == "__main__":
    def run_case(B, C, H, W, seed):
        cq = max(C // 8, 1)
        ks = jax.random.split(jax.random.PRNGKey(seed), 7)
        x = jax.random.normal(ks[0], (B, C, H, W), dtype=jnp.float32)
        wq = jax.random.normal(ks[1], (cq, C), dtype=jnp.float32) * 0.1
        bq = jax.random.normal(ks[2], (cq,), dtype=jnp.float32) * 0.1
        wk = jax.random.normal(ks[3], (cq, C), dtype=jnp.float32) * 0.1
        bk = jax.random.normal(ks[4], (cq,), dtype=jnp.float32) * 0.1
        wv = jax.random.normal(ks[5], (C, C), dtype=jnp.float32) * 0.1
        bv = jax.random.normal(ks[6], (C,), dtype=jnp.float32) * 0.1
        # nn.Parameter(torch.zeros(1)) initializes gamma to 0; use a nonzero
        # value so the attention path actually contributes to the output.
        gamma = jnp.full((1,), 0.5, dtype=jnp.float32)

        out = cca_forward(x, wq, bq, wk, bk, wv, bv, gamma)
        out = jax.block_until_ready(out)
        ref = cca_ref(x, wq, bq, wk, bk, wv, bv, gamma)
        assert out.shape == (B, C, H, W)
        np.testing.assert_allclose(np.asarray(out), np.asarray(ref),
                                   rtol=2e-2, atol=2e-2)

    # C >= 8 so in_dim // 8 >= 1; H != W exercises the row/column bookkeeping.
    run_case(B=2, C=16, H=16, W=8, seed=0)
    # Non-multiple-of-8 spatial sizes exercise the padding + key-mask path.
    run_case(B=1, C=8, H=10, W=9, seed=1)
    print("KERNEL_OK")
</pallas_src>

<mosaic_0001>
module attributes {stable_mosaic.version = 11 : i64} {
  func.func @cca_attn_kernel(%arg0: i32, %arg1: i32, %arg2: memref<1x16x8x128xbf16, #tpu.memory_space<vmem>>, %arg3: memref<1x16x8x128xbf16, #tpu.memory_space<vmem>>, %arg4: memref<1x16x8x128xbf16, #tpu.memory_space<vmem>>, %arg5: memref<1x8x16x128xbf16, #tpu.memory_space<vmem>>, %arg6: memref<1x8x16x128xbf16, #tpu.memory_space<vmem>>, %arg7: memref<1x8x16x128xbf16, #tpu.memory_space<vmem>>, %arg8: memref<1x16x8x128xbf16, #tpu.memory_space<vmem>>, %arg9: memref<1x8x16x128xbf16, #tpu.memory_space<vmem>>) attributes {dimension_semantics = [#tpu.dimension_semantics<parallel>, #tpu.dimension_semantics<parallel>], iteration_bounds = array<i64: 2, 1>, scalar_prefetch = 0 : i64, scratch_operands = 0 : i64, tpu.core_type = #tpu.core_type<tc>, window_params = [{transform_indices = @transform_0, window_bounds = array<i64: 1, 16, 8, 128>}, {transform_indices = @transform_1, window_bounds = array<i64: 1, 16, 8, 128>}, {transform_indices = @transform_2, window_bounds = array<i64: 1, 16, 8, 128>}, {transform_indices = @transform_3, window_bounds = array<i64: 1, 8, 16, 128>}, {transform_indices = @transform_4, window_bounds = array<i64: 1, 8, 16, 128>}, {transform_indices = @transform_5, window_bounds = array<i64: 1, 8, 16, 128>}, {transform_indices = @transform_6, window_bounds = array<i64: 1, 16, 8, 128>}, {transform_indices = @transform_7, window_bounds = array<i64: 1, 8, 16, 128>}]} {
    %c0 = arith.constant 0 : index
    %c0_0 = arith.constant 0 : index
    %c0_1 = arith.constant 0 : index
    %c0_2 = arith.constant 0 : index
    %0 = vector.load %arg2[%c0, %c0_0, %c0_1, %c0_2] : memref<1x16x8x128xbf16, #tpu.memory_space<vmem>>, vector<1x16x8x128xbf16>
    %1 = vector.shape_cast %0 : vector<1x16x8x128xbf16> to vector<16x8x128xbf16>
    %c0_3 = arith.constant 0 : index
    %c0_4 = arith.constant 0 : index
    %c0_5 = arith.constant 0 : index
    %c0_6 = arith.constant 0 : index
    %2 = vector.load %arg3[%c0_3, %c0_4, %c0_5, %c0_6] : memref<1x16x8x128xbf16, #tpu.memory_space<vmem>>, vector<1x16x8x128xbf16>
    %3 = vector.shape_cast %2 : vector<1x16x8x128xbf16> to vector<16x8x128xbf16>
    %c0_7 = arith.constant 0 : index
    %c0_8 = arith.constant 0 : index
    %c0_9 = arith.constant 0 : index
    %c0_10 = arith.constant 0 : index
    %4 = vector.load %arg4[%c0_7, %c0_8, %c0_9, %c0_10] : memref<1x16x8x128xbf16, #tpu.memory_space<vmem>>, vector<1x16x8x128xbf16>
    %5 = vector.shape_cast %4 : vector<1x16x8x128xbf16> to vector<16x8x128xbf16>
    %c0_11 = arith.constant 0 : index
    %c0_12 = arith.constant 0 : index
    %c0_13 = arith.constant 0 : index
    %c0_14 = arith.constant 0 : index
    %6 = vector.load %arg5[%c0_11, %c0_12, %c0_13, %c0_14] : memref<1x8x16x128xbf16, #tpu.memory_space<vmem>>, vector<1x8x16x128xbf16>
    %7 = vector.shape_cast %6 : vector<1x8x16x128xbf16> to vector<8x16x128xbf16>
    %c0_15 = arith.constant 0 : index
    %c0_16 = arith.constant 0 : index
    %c0_17 = arith.constant 0 : index
    %c0_18 = arith.constant 0 : index
    %8 = vector.load %arg6[%c0_15, %c0_16, %c0_17, %c0_18] : memref<1x8x16x128xbf16, #tpu.memory_space<vmem>>, vector<1x8x16x128xbf16>
    %9 = vector.shape_cast %8 : vector<1x8x16x128xbf16> to vector<8x16x128xbf16>
    %c0_19 = arith.constant 0 : index
    %c0_20 = arith.constant 0 : index
    %c0_21 = arith.constant 0 : index
    %c0_22 = arith.constant 0 : index
    %10 = vector.load %arg7[%c0_19, %c0_20, %c0_21, %c0_22] : memref<1x8x16x128xbf16, #tpu.memory_space<vmem>>, vector<1x8x16x128xbf16>
    %11 = vector.shape_cast %10 : vector<1x8x16x128xbf16> to vector<8x16x128xbf16>
    %c16_i32 = arith.constant 16 : i32
    %12 = arith.muli %arg1, %c16_i32 : i32
    %cst = arith.constant dense<0.000000e+00> : vector<16x8x8xf32>
    %13 = tpu.matmul %1, %3, %cst {dimension_numbers = #tpu.dot_dimension_numbers<[2], [2], [1], [1], [0, 0, 0, 1, 1, 1], [0], [0]>} : vector<16x8x128xbf16>, vector<16x8x128xbf16>, vector<16x8x8xf32> -> vector<16x8x8xf32>
    %cst_23 = arith.constant dense<0.000000e+00> : vector<8x16x16xf32>
    %14 = tpu.matmul %7, %9, %cst_23 {dimension_numbers = #tpu.dot_dimension_numbers<[2], [2], [1], [1], [0, 0, 0, 1, 1, 1], [0], [0]>} : vector<8x16x128xbf16>, vector<8x16x128xbf16>, vector<8x16x16xf32> -> vector<8x16x16xf32>
    %15 = tpu.iota {dimensions = array<i32: 2>} : vector<1x16x16xi32>
    %16 = tpu.iota {dimensions = array<i32: 1>} : vector<1x16x16xi32>
    %17 = vector.broadcast %12 : i32 to vector<1x16x16xi32>
    %18 = arith.addi %16, %17 : vector<1x16x16xi32>
    %19 = arith.cmpi eq, %15, %18 : vector<1x16x16xi32>
    %cst_24 = arith.constant -1.000000e+30 : f32
    %20 = vector.shape_cast %19 : vector<1x16x16xi1> to vector<1x16x16xi1>
    %21 = vector.broadcast %20 : vector<1x16x16xi1> to vector<8x16x16xi1>
    %22 = vector.broadcast %cst_24 : f32 to vector<8x16x16xf32>
    %23 = arith.select %21, %22, %14 : vector<8x16x16xi1>, vector<8x16x16xf32>
    %24 = tpu.iota {dimensions = array<i32: 0>} : vector<16x16xi32>
    %25 = tpu.iota {dimensions = array<i32: 1>} : vector<16x16xi32>
    %c0_i32 = arith.constant 0 : i32
    %26 = vector.broadcast %c0_i32 : i32 to vector<16x16xi32>
    %27 = arith.addi %24, %26 : vector<16x16xi32>
    %28 = arith.cmpi eq, %27, %25 : vector<16x16xi32>
    %29 = arith.extui %28 : vector<16x16xi1> to vector<16x16xi32>
    %30 = arith.sitofp %29 : vector<16x16xi32> to vector<16x16xf32>
    %31 = tpu.iota {dimensions = array<i32: 0>} : vector<8x8xi32>
    %32 = tpu.iota {dimensions = array<i32: 1>} : vector<8x8xi32>
    %c0_i32_25 = arith.constant 0 : i32
    %33 = vector.broadcast %c0_i32_25 : i32 to vector<8x8xi32>
    %34 = arith.addi %31, %33 : vector<8x8xi32>
    %35 = arith.cmpi eq, %34, %32 : vector<8x8xi32>
    %36 = arith.extui %35 : vector<8x8xi1> to vector<8x8xi32>
    %37 = arith.sitofp %36 : vector<8x8xi32> to vector<8x8xf32>
    %cst_26 = arith.constant dense<0xFF800000> : vector<16x8xf32>
    %38 = vector.multi_reduction <maximumf>, %13, %cst_26 [2] : vector<16x8x8xf32> to vector<16x8xf32>
    %cst_27 = arith.constant dense<0xFF800000> : vector<8x16xf32>
    %39 = vector.multi_reduction <maximumf>, %23, %cst_27 [2] : vector<8x16x16xf32> to vector<8x16xf32>
    %cst_28 = arith.constant dense<0.000000e+00> : vector<16x8xf32>
    %40 = tpu.matmul %30, %39, %cst_28 {dimension_numbers = #tpu.dot_dimension_numbers<[1], [1], [0], [0], [0, 0, 1, 0], [], []>} : vector<16x16xf32>, vector<8x16xf32>, vector<16x8xf32> -> vector<16x8xf32>
    %41 = arith.maximumf %38, %40 : vector<16x8xf32>
    %cst_29 = arith.constant dense<0.000000e+00> : vector<8x16xf32>
    %42 = tpu.matmul %37, %41, %cst_29 {dimension_numbers = #tpu.dot_dimension_numbers<[1], [1], [0], [0], [0, 0, 1, 0], [], []>} : vector<8x8xf32>, vector<16x8xf32>, vector<8x16xf32> -> vector<8x16xf32>
    %43 = vector.shape_cast %41 : vector<16x8xf32> to vector<16x8x1xf32>
    %44 = vector.broadcast %43 : vector<16x8x1xf32> to vector<16x8x8xf32>
    %45 = arith.subf %13, %44 : vector<16x8x8xf32>
    %46 = math.exp %45 : vector<16x8x8xf32>
    %47 = vector.shape_cast %42 : vector<8x16xf32> to vector<8x16x1xf32>
    %48 = vector.broadcast %47 : vector<8x16x1xf32> to vector<8x16x16xf32>
    %49 = arith.subf %23, %48 : vector<8x16x16xf32>
    %50 = math.exp %49 : vector<8x16x16xf32>
    %cst_30 = arith.constant dense<0.000000e+00> : vector<16x8xf32>
    %51 = vector.multi_reduction <add>, %46, %cst_30 [2] : vector<16x8x8xf32> to vector<16x8xf32>
    %cst_31 = arith.constant dense<0.000000e+00> : vector<8x16xf32>
    %52 = vector.multi_reduction <add>, %50, %cst_31 [2] : vector<8x16x16xf32> to vector<8x16xf32>
    %cst_32 = arith.constant dense<0.000000e+00> : vector<16x8xf32>
    %53 = tpu.matmul %30, %52, %cst_32 {dimension_numbers = #tpu.dot_dimension_numbers<[1], [1], [0], [0], [0, 0, 1, 0], [], []>} : vector<16x16xf32>, vector<8x16xf32>, vector<16x8xf32> -> vector<16x8xf32>
    %54 = arith.addf %51, %53 : vector<16x8xf32>
    %55 = tpu.reciprocal %54 {approx = true} : vector<16x8xf32> -> vector<16x8xf32>
    %cst_33 = arith.constant dense<0.000000e+00> : vector<8x16xf32>
    %56 = tpu.matmul %37, %55, %cst_33 {dimension_numbers = #tpu.dot_dimension_numbers<[1], [1], [0], [0], [0, 0, 1, 0], [], []>} : vector<8x8xf32>, vector<16x8xf32>, vector<8x16xf32> -> vector<8x16xf32>
    %57 = arith.truncf %46 : vector<16x8x8xf32> to vector<16x8x8xbf16>
    %cst_34 = arith.constant dense<0.000000e+00> : vector<16x8x128xf32>
    %58 = tpu.matmul %57, %5, %cst_34 {dimension_numbers = #tpu.dot_dimension_numbers<[2], [1], [1], [2], [0, 0, 0, 1, 1, 2], [0], [0]>} : vector<16x8x8xbf16>, vector<16x8x128xbf16>, vector<16x8x128xf32> -> vector<16x8x128xf32>
    %59 = vector.shape_cast %55 : vector<16x8xf32> to vector<16x8x1xf32>
    %60 = vector.broadcast %59 : vector<16x8x1xf32> to vector<16x8x128xf32>
    %61 = arith.mulf %58, %60 : vector<16x8x128xf32>
    %62 = arith.truncf %50 : vector<8x16x16xf32> to vector<8x16x16xbf16>
    %cst_35 = arith.constant dense<0.000000e+00> : vector<8x16x128xf32>
    %63 = tpu.matmul %62, %11, %cst_35 {dimension_numbers = #tpu.dot_dimension_numbers<[2], [1], [1], [2], [0, 0, 0, 1, 1, 2], [0], [0]>} : vector<8x16x16xbf16>, vector<8x16x128xbf16>, vector<8x16x128xf32> -> vector<8x16x128xf32>
    %64 = vector.shape_cast %56 : vector<8x16xf32> to vector<8x16x1xf32>
    %65 = vector.broadcast %64 : vector<8x16x1xf32> to vector<8x16x128xf32>
    %66 = arith.mulf %63, %65 : vector<8x16x128xf32>
    %67 = arith.truncf %61 : vector<16x8x128xf32> to vector<16x8x128xbf16>
    %c0_36 = arith.constant 0 : index
    %c0_37 = arith.constant 0 : index
    %c0_38 = arith.constant 0 : index
    %c0_39 = arith.constant 0 : index
    %68 = vector.load %arg8[%c0_36, %c0_37, %c0_38, %c0_39] : memref<1x16x8x128xbf16, #tpu.memory_space<vmem>>, vector<1x16x8x128xbf16>
    %69 = vector.shape_cast %68 : vector<1x16x8x128xbf16> to vector<16x8x128xbf16>
    %70 = vector.shape_cast %67 : vector<16x8x128xbf16> to vector<1x16x8x128xbf16>
    tpu.vector_store %arg8[%c0_36, %c0_37, %c0_38, %c0_39], %70 {strides = array<i32>} : memref<1x16x8x128xbf16, #tpu.memory_space<vmem>>, vector<1x16x8x128xbf16>,
    %71 = arith.truncf %66 : vector<8x16x128xf32> to vector<8x16x128xbf16>
    %c0_40 = arith.constant 0 : index
    %c0_41 = arith.constant 0 : index
    %c0_42 = arith.constant 0 : index
    %c0_43 = arith.constant 0 : index
    %72 = vector.load %arg9[%c0_40, %c0_41, %c0_42, %c0_43] : memref<1x8x16x128xbf16, #tpu.memory_space<vmem>>, vector<1x8x16x128xbf16>
    %73 = vector.shape_cast %72 : vector<1x8x16x128xbf16> to vector<8x16x128xbf16>
    %74 = vector.shape_cast %71 : vector<8x16x128xbf16> to vector<1x8x16x128xbf16>
    tpu.vector_store %arg9[%c0_40, %c0_41, %c0_42, %c0_43], %74 {strides = array<i32>} : memref<1x8x16x128xbf16, #tpu.memory_space<vmem>>, vector<1x8x16x128xbf16>,
    return
  }
  func.func @transform_0(%arg0: i32, %arg1: i32) -> (i32, i32, i32, i32) {
    %c0_i32 = arith.constant 0 : i32
    %c0_i32_0 = arith.constant 0 : i32
    %c0_i32_1 = arith.constant 0 : i32
    return %arg0, %arg1, %c0_i32, %c0_i32_0 : i32, i32, i32, i32
  }
  func.func @transform_1(%arg0: i32, %arg1: i32) -> (i32, i32, i32, i32) {
    %c0_i32 = arith.constant 0 : i32
    %c0_i32_0 = arith.constant 0 : i32
    %c0_i32_1 = arith.constant 0 : i32
    return %arg0, %arg1, %c0_i32, %c0_i32_0 : i32, i32, i32, i32
  }
  func.func @transform_2(%arg0: i32, %arg1: i32) -> (i32, i32, i32, i32) {
    %c0_i32 = arith.constant 0 : i32
    %c0_i32_0 = arith.constant 0 : i32
    %c0_i32_1 = arith.constant 0 : i32
    return %arg0, %arg1, %c0_i32, %c0_i32_0 : i32, i32, i32, i32
  }
  func.func @transform_3(%arg0: i32, %arg1: i32) -> (i32, i32, i32, i32) {
    %c0_i32 = arith.constant 0 : i32
    %c0_i32_0 = arith.constant 0 : i32
    %c0_i32_1 = arith.constant 0 : i32
    return %arg0, %c0_i32, %arg1, %c0_i32_0 : i32, i32, i32, i32
  }
  func.func @transform_4(%arg0: i32, %arg1: i32) -> (i32, i32, i32, i32) {
    %c0_i32 = arith.constant 0 : i32
    %c0_i32_0 = arith.constant 0 : i32
    %c0_i32_1 = arith.constant 0 : i32
    %c0_i32_2 = arith.constant 0 : i32
    return %arg0, %c0_i32, %c0_i32_0, %c0_i32_1 : i32, i32, i32, i32
  }
  func.func @transform_5(%arg0: i32, %arg1: i32) -> (i32, i32, i32, i32) {
    %c0_i32 = arith.constant 0 : i32
    %c0_i32_0 = arith.constant 0 : i32
    %c0_i32_1 = arith.constant 0 : i32
    %c0_i32_2 = arith.constant 0 : i32
    return %arg0, %c0_i32, %c0_i32_0, %c0_i32_1 : i32, i32, i32, i32
  }
  func.func @transform_6(%arg0: i32, %arg1: i32) -> (i32, i32, i32, i32) {
    %c0_i32 = arith.constant 0 : i32
    %c0_i32_0 = arith.constant 0 : i32
    %c0_i32_1 = arith.constant 0 : i32
    return %arg0, %arg1, %c0_i32, %c0_i32_0 : i32, i32, i32, i32
  }
  func.func @transform_7(%arg0: i32, %arg1: i32) -> (i32, i32, i32, i32) {
    %c0_i32 = arith.constant 0 : i32
    %c0_i32_0 = arith.constant 0 : i32
    %c0_i32_1 = arith.constant 0 : i32
    return %arg0, %c0_i32, %arg1, %c0_i32_0 : i32, i32, i32, i32
  }
}

</mosaic_0001>

<llo_original>
// kernel: tpu_custom_call.1
$region0: #{tpu_custom_call.1}
  #allocation0 [shape = 'u32[]', space=smem, size = 0x4, offset = 0x4, fixed_abs, tag = 'smem constant byte address 0x4 - core index']
  #allocation1 [shape = 'u32[72,128]{1,0:T(1,128)}', space=vmem, size = 0x9000, scoped, tag = 'internal scratch']
  %s0 = inlined_call_operand.hbm [shape: bf16[2,16,8,128], index: 0, kind: input, shape index: {}]
  %s1 = inlined_call_operand.hbm [shape: bf16[2,16,8,128], index: 1, kind: input, shape index: {}]
  %s2 = inlined_call_operand.hbm [shape: bf16[2,16,8,128], index: 2, kind: input, shape index: {}]
  %s3 = inlined_call_operand.hbm [shape: bf16[2,8,16,128], index: 3, kind: input, shape index: {}]
  %s4 = inlined_call_operand.hbm [shape: bf16[2,8,16,128], index: 4, kind: input, shape index: {}]
  %s5 = inlined_call_operand.hbm [shape: bf16[2,8,16,128], index: 5, kind: input, shape index: {}]
  %s6 = inlined_call_operand.hbm [shape: bf16[2,16,8,128], index: 6, kind: output, shape index: {0}]
  %s7 = inlined_call_operand.hbm [shape: bf16[2,8,16,128], index: 7, kind: output, shape index: {1}]
  %8 = xla_tuple %s6, %s7
  %s9 = sld [smem:[#allocation0]]
  $region89: #{tpu_custom_call.1} parent=0
    _
  %s11 = ssub.s32 1, %s9
  %s12 = scalar_select 0, %s11, %s9
  $region1: #{tpu_custom_call.1} parent=0
    #allocation2 [shape = 'u8[65536]{0}', space=vmem, size = 0x10000, scoped, tag = 'input window, operand 0']
    #allocation3 [shape = 's32[2]{0}', space=sflag, size = 0x8, scoped, tag = 'scoped memory for tpu_custom_call.1']
    #allocation4 [shape = 's32[2]{0}', space=sflag, size = 0x8, scoped, tag = 'scoped memory for tpu_custom_call.1']
    #allocation5 [shape = 'u8[65536]{0}', space=vmem, size = 0x10000, scoped, tag = 'input window, operand 1']
    #allocation6 [shape = 's32[2]{0}', space=sflag, size = 0x8, scoped, tag = 'scoped memory for tpu_custom_call.1']
    #allocation7 [shape = 'u8[65536]{0}', space=vmem, size = 0x10000, scoped, tag = 'input window, operand 2']
    #allocation8 [shape = 'u8[65536]{0}', space=vmem, size = 0x10000, scoped, tag = 'input window, operand 3']
    #allocation9 [shape = 's32[2]{0}', space=sflag, size = 0x8, scoped, tag = 'scoped memory for tpu_custom_call.1']
    #allocation10 [shape = 'u8[65536]{0}', space=vmem, size = 0x10000, scoped, tag = 'input window, operand 4']
    #allocation11 [shape = 'u8[65536]{0}', space=vmem, size = 0x10000, scoped, tag = 'input window, operand 5']
    #allocation12 [shape = 's32[2]{0}', space=sflag, size = 0x8, scoped, tag = 'scoped memory for tpu_custom_call.1']
    #allocation13 [shape = 'u8[65536]{0}', space=vmem, size = 0x10000, scoped, tag = 'output window, operand 0']
    #allocation14 [shape = 'u8[65536]{0}', space=vmem, size = 0x10000, scoped, tag = 'output window, operand 1']
    #allocation15 [shape = 's32[2]{0}', space=sflag, size = 0x8, scoped, tag = 'scoped memory for tpu_custom_call.1']
    %13 = vsyncpa [#allocation3], 0
    %s14 = scalar_lea.sflag [#allocation3], 1
    %15 = vsyncpa %s14, 0
    %16 = vsyncpa [#allocation6], 0
    %s17 = scalar_lea.sflag [#allocation6], 1
    %18 = vsyncpa %s17, 0
    %19 = vsyncpa [#allocation9], 0
    %s20 = scalar_lea.sflag [#allocation9], 1
    %21 = vsyncpa %s20, 0
    %22 = vsyncpa [#allocation12], 0
    %s23 = scalar_lea.sflag [#allocation12], 1
    %24 = vsyncpa %s23, 0
    %25 = vsyncpa [#allocation4], 0
    %s26 = scalar_lea.sflag [#allocation4], 1
    %27 = vsyncpa %s26, 0
    %28 = vsyncpa [#allocation15], 0
    %s29 = scalar_lea.sflag [#allocation15], 1
    %30 = vsyncpa %s29, 0
    loop: start=0, step=1, limit=4
    $region2: #{tpu_custom_call.1} parent=1 // loop_pre_header
      _
    $region3: #{tpu_custom_call.1} parent=1 // loop_header
      %s32 = sphi 0, %s36
      %p33 = scmp.ge.s32.totalorder %s32, 4
      %s39 = sphi 0, %s51
      %s40 = sphi 0, %s47
      %s41 = sphi 0, %s39
      %s42 = sphi 0, %s40
      %s43 = sphi 0, %s41
      %s44 = sphi 0, %s42
      %s56 = sphi 0, %s58
      %s59 = sphi 0, %s56
      %s60 = sphi 0, %s59
      %s76 = sphi 0, %s60
      %s84 = sphi 0, %s86
      %s87 = sphi 0, %s84
      %s88 = sphi 0, %s87
      %s104 = sphi 0, %s88
      %s112 = sphi 0, %s114
      %s115 = sphi 0, %s112
      %s116 = sphi 0, %s115
      %s132 = sphi 0, %s116
      %s140 = sphi 0, %s142
      %s143 = sphi 0, %s140
      %s144 = sphi 0, %s143
      %s160 = sphi 0, %s144
      %s166 = sphi 0, %s168
      %s169 = sphi 0, %s166
      %s170 = sphi 0, %s169
      %s186 = sphi 0, %s170
      %s192 = sphi 0, %s194
      %s195 = sphi 0, %s192
      %s196 = sphi 0, %s195
      %s212 = sphi 0, %s196
      %s220 = sphi 0, %s222
      %s223 = sphi 0, %s220
      %s224 = sphi 0, %s223
      %s240 = sphi 0, %s224
      %s248 = sphi 0, %s250
      %s251 = sphi 0, %s248
      %s252 = sphi 0, %s251
      %s268 = sphi 0, %s252
    $region4: #{tpu_custom_call.1} parent=1 // loop_header_branch
      %35 = sbr.rel (%p33) target = $region8
    $region5: #{tpu_custom_call.1} parent=1 // loop_body
      %s37 = ssub.s32 %s32, 1
      %s38 = ssub.s32 %s32, 2
      %s45 = sadd.s32 1, %s40
      %p46 = scmp.ge.s32.totalorder %s45, 1
      %s47 = scalar_select %p46, 0, %s45
      %s48 = sadd.s32 1, %s39
      %s49 = scalar_select %p46, %s48, %s39
      %p50 = scmp.ge.s32.totalorder %s49, 2
      %s51 = scalar_select %p50, 0, %s49
      %s52 = ssub.s32 %s39, %s51
      %s53 = ssub.s32 %s40, %s47
      %s54 = sor.u32 %s52, %s53
      %p55 = scmp.eq.s32.totalorder %s54, 0
      %s57 = sadd.s32 %s56, 1
      %s58 = scalar_select %p55, %s56, %s57
      %p61 = pneg %p55
      %p62 = scmp.eq.s32.totalorder %s32, 1
      %p63 = por %p61, %p62
      %p64 = scmp.ne.s32.totalorder %s56, %s59
      %p65 = scmp.eq.s32.totalorder %s32, 0
      %p66 = por %p64, %p65
      %p67 = scmp.ne.s32.totalorder %s56, %s59
      %p68 = scmp.eq.s32.totalorder %s37, 1
      %p69 = por %p67, %p68
      %p70 = scmp.ne.s32.totalorder %s59, %s60
      %p71 = scmp.eq.s32.totalorder %s37, 0
      %p72 = por %p70, %p71
      %p73 = scmp.ne.s32.totalorder %s59, %s60
      %p74 = scmp.eq.s32.totalorder %s38, 1
      %p75 = por %p73, %p74
      %p77 = scmp.ne.s32.totalorder %s60, %s76
      %p78 = scmp.eq.s32.totalorder %s38, 0
      %p79 = por %p77, %p78
      %s80 = ssub.s32 %s39, %s51
      %s81 = ssub.s32 %s40, %s47
      %s82 = sor.u32 %s80, %s81
      %p83 = scmp.eq.s32.totalorder %s82, 0
      %s85 = sadd.s32 %s84, 1
      %s86 = scalar_select %p83, %s84, %s85
      %p89 = pneg %p83
      %p90 = scmp.eq.s32.totalorder %s32, 1
      %p91 = por %p89, %p90
      %p92 = scmp.ne.s32.totalorder %s84, %s87
      %p93 = scmp.eq.s32.totalorder %s32, 0
      %p94 = por %p92, %p93
      %p95 = scmp.ne.s32.totalorder %s84, %s87
      %p96 = scmp.eq.s32.totalorder %s37, 1
      %p97 = por %p95, %p96
      %p98 = scmp.ne.s32.totalorder %s87, %s88
      %p99 = scmp.eq.s32.totalorder %s37, 0
      %p100 = por %p98, %p99
      %p101 = scmp.ne.s32.totalorder %s87, %s88
      %p102 = scmp.eq.s32.totalorder %s38, 1
      %p103 = por %p101, %p102
      %p105 = scmp.ne.s32.totalorder %s88, %s104
      %p106 = scmp.eq.s32.totalorder %s38, 0
      %p107 = por %p105, %p106
      %s108 = ssub.s32 %s39, %s51
      %s109 = ssub.s32 %s40, %s47
      %s110 = sor.u32 %s108, %s109
      %p111 = scmp.eq.s32.totalorder %s110, 0
      %s113 = sadd.s32 %s112, 1
      %s114 = scalar_select %p111, %s112, %s113
      %p117 = pneg %p111
      %p118 = scmp.eq.s32.totalorder %s32, 1
      %p119 = por %p117, %p118
      %p120 = scmp.ne.s32.totalorder %s112, %s115
      %p121 = scmp.eq.s32.totalorder %s32, 0
      %p122 = por %p120, %p121
      %p123 = scmp.ne.s32.totalorder %s112, %s115
      %p124 = scmp.eq.s32.totalorder %s37, 1
      %p125 = por %p123, %p124
      %p126 = scmp.ne.s32.totalorder %s115, %s116
      %p127 = scmp.eq.s32.totalorder %s37, 0
      %p128 = por %p126, %p127
      %p129 = scmp.ne.s32.totalorder %s115, %s116
      %p130 = scmp.eq.s32.totalorder %s38, 1
      %p131 = por %p129, %p130
      %p133 = scmp.ne.s32.totalorder %s116, %s132
      %p134 = scmp.eq.s32.totalorder %s38, 0
      %p135 = por %p133, %p134
      %s136 = ssub.s32 %s39, %s51
      %s137 = ssub.s32 %s40, %s47
      %s138 = sor.u32 %s136, %s137
      %p139 = scmp.eq.s32.totalorder %s138, 0
      %s141 = sadd.s32 %s140, 1
      %s142 = scalar_select %p139, %s140, %s141
      %p145 = pneg %p139
      %p146 = scmp.eq.s32.totalorder %s32, 1
      %p147 = por %p145, %p146
      %p148 = scmp.ne.s32.totalorder %s140, %s143
      %p149 = scmp.eq.s32.totalorder %s32, 0
      %p150 = por %p148, %p149
      %p151 = scmp.ne.s32.totalorder %s140, %s143
      %p152 = scmp.eq.s32.totalorder %s37, 1
      %p153 = por %p151, %p152
      %p154 = scmp.ne.s32.totalorder %s143, %s144
      %p155 = scmp.eq.s32.totalorder %s37, 0
      %p156 = por %p154, %p155
      %p157 = scmp.ne.s32.totalorder %s143, %s144
      %p158 = scmp.eq.s32.totalorder %s38, 1
      %p159 = por %p157, %p158
      %p161 = scmp.ne.s32.totalorder %s144, %s160
      %p162 = scmp.eq.s32.totalorder %s38, 0
      %p163 = por %p161, %p162
      %s164 = ssub.s32 %s39, %s51
      %p165 = scmp.eq.s32.totalorder %s164, 0
      %s167 = sadd.s32 %s166, 1
      %s168 = scalar_select %p165, %s166, %s167
      %p171 = pneg %p165
      %p172 = scmp.eq.s32.totalorder %s32, 1
      %p173 = por %p171, %p172
      %p174 = scmp.ne.s32.totalorder %s166, %s169
      %p175 = scmp.eq.s32.totalorder %s32, 0
      %p176 = por %p174, %p175
      %p177 = scmp.ne.s32.totalorder %s166, %s169
      %p178 = scmp.eq.s32.totalorder %s37, 1
      %p179 = por %p177, %p178
      %p180 = scmp.ne.s32.totalorder %s169, %s170
      %p181 = scmp.eq.s32.totalorder %s37, 0
      %p182 = por %p180, %p181
      %p183 = scmp.ne.s32.totalorder %s169, %s170
      %p184 = scmp.eq.s32.totalorder %s38, 1
      %p185 = por %p183, %p184
      %p187 = scmp.ne.s32.totalorder %s170, %s186
      %p188 = scmp.eq.s32.totalorder %s38, 0
      %p189 = por %p187, %p188
      %s190 = ssub.s32 %s39, %s51
      %p191 = scmp.eq.s32.totalorder %s190, 0
      %s193 = sadd.s32 %s192, 1
      %s194 = scalar_select %p191, %s192, %s193
      %p197 = pneg %p191
      %p198 = scmp.eq.s32.totalorder %s32, 1
      %p199 = por %p197, %p198
      %p200 = scmp.ne.s32.totalorder %s192, %s195
      %p201 = scmp.eq.s32.totalorder %s32, 0
      %p202 = por %p200, %p201
      %p203 = scmp.ne.s32.totalorder %s192, %s195
      %p204 = scmp.eq.s32.totalorder %s37, 1
      %p205 = por %p203, %p204
      %p206 = scmp.ne.s32.totalorder %s195, %s196
      %p207 = scmp.eq.s32.totalorder %s37, 0
      %p208 = por %p206, %p207
      %p209 = scmp.ne.s32.totalorder %s195, %s196
      %p210 = scmp.eq.s32.totalorder %s38, 1
      %p211 = por %p209, %p210
      %p213 = scmp.ne.s32.totalorder %s196, %s212
      %p214 = scmp.eq.s32.totalorder %s38, 0
      %p215 = por %p213, %p214
      %s216 = ssub.s32 %s39, %s51
      %s217 = ssub.s32 %s40, %s47
      %s218 = sor.u32 %s216, %s217
      %p219 = scmp.eq.s32.totalorder %s218, 0
      %s221 = sadd.s32 %s220, 1
      %s222 = scalar_select %p219, %s220, %s221
      %p225 = pneg %p219
      %p226 = scmp.eq.s32.totalorder %s32, 1
      %p227 = por %p225, %p226
      %p228 = scmp.ne.s32.totalorder %s220, %s223
      %p229 = scmp.eq.s32.totalorder %s32, 0
      %p230 = por %p228, %p229
      %p231 = scmp.ne.s32.totalorder %s220, %s223
      %p232 = scmp.eq.s32.totalorder %s37, 1
      %p233 = por %p231, %p232
      %p234 = scmp.ne.s32.totalorder %s223, %s224
      %p235 = scmp.eq.s32.totalorder %s37, 0
      %p236 = por %p234, %p235
      %p237 = scmp.ne.s32.totalorder %s223, %s224
      %p238 = scmp.eq.s32.totalorder %s38, 1
      %p239 = por %p237, %p238
      %p241 = scmp.ne.s32.totalorder %s224, %s240
      %p242 = scmp.eq.s32.totalorder %s38, 0
      %p243 = por %p241, %p242
      %s244 = ssub.s32 %s39, %s51
      %s245 = ssub.s32 %s40, %s47
      %s246 = sor.u32 %s244, %s245
      %p247 = scmp.eq.s32.totalorder %s246, 0
      %s249 = sadd.s32 %s248, 1
      %s250 = scalar_select %p247, %s248, %s249
      %p253 = pneg %p247
      %p254 = scmp.eq.s32.totalorder %s32, 1
      %p255 = por %p253, %p254
      %p256 = scmp.ne.s32.totalorder %s248, %s251
      %p257 = scmp.eq.s32.totalorder %s32, 0
      %p258 = por %p256, %p257
      %p259 = scmp.ne.s32.totalorder %s248, %s251
      %p260 = scmp.eq.s32.totalorder %s37, 1
      %p261 = por %p259, %p260
      %p262 = scmp.ne.s32.totalorder %s251, %s252
      %p263 = scmp.eq.s32.totalorder %s37, 0
      %p264 = por %p262, %p263
      %p265 = scmp.ne.s32.totalorder %s251, %s252
      %p266 = scmp.eq.s32.totalorder %s38, 1
      %p267 = por %p265, %p266
      %p269 = scmp.ne.s32.totalorder %s252, %s268
      %p270 = scmp.eq.s32.totalorder %s38, 0
      %p271 = por %p269, %p270
      %p272 = scmp.le.s32.totalorder 1, %s32
      %p273 = scmp.lt.s32.totalorder %s32, 3
      %p274 = pnand %p272, %p273
      %p275 = pneg %p274
      // Predicated region
      $region9: #{tpu_custom_call.1} parent=5 // pred_check
        _
      $region10: #{tpu_custom_call.1} parent=5 // pred_check_branch
        %277 = sbr.rel (%p274) target = $region12
      $region11: #{tpu_custom_call.1} parent=5 // pred_region
        %s278 = ssub.s32 %s32, 1
      $region12: #{tpu_custom_call.1} parent=5 // pred_fallthru
        _
      %p279 = scmp.lt.s32.totalorder %s32, 2
      // Predicated region
      $region13: #{tpu_custom_call.1} parent=5 // pred_check
        %p280 = pneg %p279
      $region14: #{tpu_custom_call.1} parent=5 // pred_check_branch
        %282 = sbr.rel (%p280) target = $region16
      $region15: #{tpu_custom_call.1} parent=5 // pred_region
        // Predicated region
        $region17: #{tpu_custom_call.1} parent=15 // pred_check
          %p283 = pneg %p66
        $region18: #{tpu_custom_call.1} parent=15 // pred_check_branch
          %285 = sbr.rel (%p283) target = $region20
        $region19: #{tpu_custom_call.1} parent=15 // pred_region
          %s286 = sand.u32 %s56, 1
          %s287 = scalar_lea.sflag [#allocation3], %s286
          %s288 = sand.u32 %s56, 1
          %s289 = smul.addr %s288, 64
          %s290 = scalar_lea.vmem [#allocation2], %s289
          %s291 = smul.u32 16, %s40
          %293 = vsyncadd %s287, 0
          %s294 = smul.addr %s39, 16
          %s295 = sadd.s32 %s291, %s294
          %s296 = smul.addr %s295, 4
          %s297 = scalar_lea.hbm %s0, %s296
          %s298 = sshll.u32 %s297, 4
          %s299 = int_to_ptr.hbm [resolvable:$true] %s298
          %s300 = sshll.u32 %s290, 4
          %s301 = int_to_ptr.vmem [resolvable:$true] %s300
          %306 = dma.hbm_to_vmem [thread:$0]  %s299, 1024, %s301, %s287, 64, 64, 4
        $region20: #{tpu_custom_call.1} parent=15 // pred_fallthru
          _
        // Predicated region
        $region21: #{tpu_custom_call.1} parent=15 // pred_check
          %p307 = pneg %p94
        $region22: #{tpu_custom_call.1} parent=15 // pred_check_branch
          %309 = sbr.rel (%p307) target = $region24
        $region23: #{tpu_custom_call.1} parent=15 // pred_region
          %s310 = sand.u32 %s32, 1
          %s311 = scalar_lea.sflag [#allocation6], %s310
          %s312 = sand.u32 %s84, 1
          %s313 = smul.addr %s312, 64
          %s314 = scalar_lea.vmem [#allocation5], %s313
          %s315 = smul.u32 16, %s40
          %317 = vsyncadd %s311, 0
          %s318 = smul.addr %s39, 16
          %s319 = sadd.s32 %s315, %s318
          %s320 = smul.addr %s319, 4
          %s321 = scalar_lea.hbm %s1, %s320
          %s322 = sshll.u32 %s321, 4
          %s323 = int_to_ptr.hbm [resolvable:$true] %s322
          %s324 = sshll.u32 %s314, 4
          %s325 = int_to_ptr.vmem [resolvable:$true] %s324
          %330 = dma.hbm_to_vmem [thread:$0]  %s323, 1024, %s325, %s311, 64, 64, 4
        $region24: #{tpu_custom_call.1} parent=15 // pred_fallthru
          _
        // Predicated region
        $region25: #{tpu_custom_call.1} parent=15 // pred_check
          %p331 = pneg %p122
        $region26: #{tpu_custom_call.1} parent=15 // pred_check_branch
          %333 = sbr.rel (%p331) target = $region28
        $region27: #{tpu_custom_call.1} parent=15 // pred_region
          %s334 = sand.u32 %s32, 1
          %s335 = scalar_lea.sflag [#allocation6], %s334
          %s336 = sand.u32 %s112, 1
          %s337 = smul.addr %s336, 64
          %s338 = scalar_lea.vmem [#allocation7], %s337
          %s339 = smul.u32 16, %s40
          %341 = vsyncadd %s335, 0
          %s342 = smul.addr %s39, 16
          %s343 = sadd.s32 %s339, %s342
          %s344 = smul.addr %s343, 4
          %s345 = scalar_lea.hbm %s2, %s344
          %s346 = sshll.u32 %s345, 4
          %s347 = int_to_ptr.hbm [resolvable:$true] %s346
          %s348 = sshll.u32 %s338, 4
          %s349 = int_to_ptr.vmem [resolvable:$true] %s348
          %354 = dma.hbm_to_vmem [thread:$0]  %s347, 1024, %s349, %s335, 64, 64, 4
        $region28: #{tpu_custom_call.1} parent=15 // pred_fallthru
          _
        // Predicated region
        $region29: #{tpu_custom_call.1} parent=15 // pred_check
          %p355 = pneg %p150
        $region30: #{tpu_custom_call.1} parent=15 // pred_check_branch
          %357 = sbr.rel (%p355) target = $region32
        $region31: #{tpu_custom_call.1} parent=15 // pred_region
          %s358 = sand.u32 %s32, 1
          %s359 = scalar_lea.sflag [#allocation9], %s358
          %s360 = sand.u32 %s140, 1
          %s361 = smul.addr %s360, 64
          %s362 = scalar_lea.vmem [#allocation8], %s361
          %s363 = smul.u32 2, %s40
          %365 = vsyncadd %s359, 0
          %s366 = smul.addr %s39, 16
          %s367 = sadd.s32 %s363, %s366
          %s368 = smul.addr %s367, 4
          %s369 = scalar_lea.hbm %s3, %s368
          %s370 = sshll.u32 %s369, 4
          %s371 = int_to_ptr.hbm [resolvable:$true] %s370
          %s372 = sshll.u32 %s362, 4
          %s373 = int_to_ptr.vmem [resolvable:$true] %s372
          %378 = dma.hbm_to_vmem [thread:$0]  %s371, 1024, %s373, %s359, 64, 64, 4
        $region32: #{tpu_custom_call.1} parent=15 // pred_fallthru
          _
        // Predicated region
        $region33: #{tpu_custom_call.1} parent=15 // pred_check
          %p379 = pneg %p176
        $region34: #{tpu_custom_call.1} parent=15 // pred_check_branch
          %381 = sbr.rel (%p379) target = $region36
        $region35: #{tpu_custom_call.1} parent=15 // pred_region
          %s382 = sand.u32 %s32, 1
          %s383 = scalar_lea.sflag [#allocation9], %s382
          %s384 = sand.u32 %s166, 1
          %s385 = smul.addr %s384, 64
          %s386 = scalar_lea.vmem [#allocation10], %s385
          %388 = vsyncadd %s383, 0
          %s389 = smul.addr %s39, 16
          %s390 = smul.addr %s389, 4
          %s391 = scalar_lea.hbm %s4, %s390
          %s392 = sshll.u32 %s391, 4
          %s393 = int_to_ptr.hbm [resolvable:$true] %s392
          %s394 = sshll.u32 %s386, 4
          %s395 = int_to_ptr.vmem [resolvable:$true] %s394
          %400 = dma.hbm_to_vmem [thread:$0]  %s393, 1024, %s395, %s383, 64, 64, 4
        $region36: #{tpu_custom_call.1} parent=15 // pred_fallthru
          _
        // Predicated region
        $region37: #{tpu_custom_call.1} parent=15 // pred_check
          %p401 = pneg %p202
        $region38: #{tpu_custom_call.1} parent=15 // pred_check_branch
          %403 = sbr.rel (%p401) target = $region40
        $region39: #{tpu_custom_call.1} parent=15 // pred_region
          %s404 = sand.u32 %s192, 1
          %s405 = scalar_lea.sflag [#allocation12], %s404
          %s406 = sand.u32 %s192, 1
          %s407 = smul.addr %s406, 64
          %s408 = scalar_lea.vmem [#allocation11], %s407
          %410 = vsyncadd %s405, 0
          %s411 = smul.addr %s39, 16
          %s412 = smul.addr %s411, 4
          %s413 = scalar_lea.hbm %s5, %s412
          %s414 = sshll.u32 %s413, 4
          %s415 = int_to_ptr.hbm [resolvable:$true] %s414
          %s416 = sshll.u32 %s408, 4
          %s417 = int_to_ptr.vmem [resolvable:$true] %s416
          %422 = dma.hbm_to_vmem [thread:$0]  %s415, 1024, %s417, %s405, 64, 64, 4
        $region40: #{tpu_custom_call.1} parent=15 // pred_fallthru
          _
      $region16: #{tpu_custom_call.1} parent=5 // pred_fallthru
        _
      %p423 = scmp.le.s32.totalorder 1, %s32
      %p424 = scmp.lt.s32.totalorder %s32, 3
      %p425 = pnand %p423, %p424
      %p426 = pneg %p425
      // Predicated region
      $region41: #{tpu_custom_call.1} parent=5 // pred_check
        _
      $region42: #{tpu_custom_call.1} parent=5 // pred_check_branch
        %428 = sbr.rel (%p425) target = $region44
      $region43: #{tpu_custom_call.1} parent=5 // pred_region
        %s429 = ssub.s32 %s32, 1
        %s430 = sand.u32 %s59, 1
        %s431 = scalar_lea.sflag [#allocation3], %s430
        %s432 = sand.u32 %s59, 1
        %s433 = smul.addr %s432, 64
        %s434 = scalar_lea.vmem [#allocation2], %s433
        // Predicated region
        $region45: #{tpu_custom_call.1} parent=43 // pred_check
          %p435 = pneg %p72
        $region46: #{tpu_custom_call.1} parent=43 // pred_check_branch
          %437 = sbr.rel (%p435) target = $region48
        $region47: #{tpu_custom_call.1} parent=43 // pred_region
          %439 = dma.done %s431, 1024
        $region48: #{tpu_custom_call.1} parent=43 // pred_fallthru
          _
        %s440 = sand.u32 %s37, 1
        %s441 = scalar_lea.sflag [#allocation6], %s440
        %s442 = sand.u32 %s87, 1
        %s443 = smul.addr %s442, 64
        %s444 = scalar_lea.vmem [#allocation5], %s443
        // Predicated region
        $region49: #{tpu_custom_call.1} parent=43 // pred_check
          %p445 = pneg %p100
        $region50: #{tpu_custom_call.1} parent=43 // pred_check_branch
          %447 = sbr.rel (%p445) target = $region52
        $region51: #{tpu_custom_call.1} parent=43 // pred_region
          %449 = dma.done %s441, 1024
        $region52: #{tpu_custom_call.1} parent=43 // pred_fallthru
          _
        %s450 = sand.u32 %s37, 1
        %s451 = scalar_lea.sflag [#allocation6], %s450
        %s452 = sand.u32 %s115, 1
        %s453 = smul.addr %s452, 64
        %s454 = scalar_lea.vmem [#allocation7], %s453
        // Predicated region
        $region53: #{tpu_custom_call.1} parent=43 // pred_check
          %p455 = pneg %p128
        $region54: #{tpu_custom_call.1} parent=43 // pred_check_branch
          %457 = sbr.rel (%p455) target = $region56
        $region55: #{tpu_custom_call.1} parent=43 // pred_region
          %459 = dma.done %s451, 1024
        $region56: #{tpu_custom_call.1} parent=43 // pred_fallthru
          _
        %s460 = sand.u32 %s37, 1
        %s461 = scalar_lea.sflag [#allocation9], %s460
        %s462 = sand.u32 %s143, 1
        %s463 = smul.addr %s462, 64
        %s464 = scalar_lea.vmem [#allocation8], %s463
        // Predicated region
        $region57: #{tpu_custom_call.1} parent=43 // pred_check
          %p465 = pneg %p156
        $region58: #{tpu_custom_call.1} parent=43 // pred_check_branch
          %467 = sbr.rel (%p465) target = $region60
        $region59: #{tpu_custom_call.1} parent=43 // pred_region
          %469 = dma.done %s461, 1024
        $region60: #{tpu_custom_call.1} parent=43 // pred_fallthru
          _
        %s470 = sand.u32 %s37, 1
        %s471 = scalar_lea.sflag [#allocation9], %s470
        %s472 = sand.u32 %s169, 1
        %s473 = smul.addr %s472, 64
        %s474 = scalar_lea.vmem [#allocation10], %s473
        // Predicated region
        $region61: #{tpu_custom_call.1} parent=43 // pred_check
          %p475 = pneg %p182
        $region62: #{tpu_custom_call.1} parent=43 // pred_check_branch
          %477 = sbr.rel (%p475) target = $region64
        $region63: #{tpu_custom_call.1} parent=43 // pred_region
          %479 = dma.done %s471, 1024
        $region64: #{tpu_custom_call.1} parent=43 // pred_fallthru
          _
        %s480 = sand.u32 %s195, 1
        %s481 = scalar_lea.sflag [#allocation12], %s480
        %s482 = sand.u32 %s195, 1
        %s483 = smul.addr %s482, 64
        %s484 = scalar_lea.vmem [#allocation11], %s483
        // Predicated region
        $region65: #{tpu_custom_call.1} parent=43 // pred_check
          %p485 = pneg %p208
        $region66: #{tpu_custom_call.1} parent=43 // pred_check_branch
          %487 = sbr.rel (%p485) target = $region68
        $region67: #{tpu_custom_call.1} parent=43 // pred_region
          %489 = dma.done %s481, 1024
        $region68: #{tpu_custom_call.1} parent=43 // pred_fallthru
          _
        %s490 = sand.u32 %s59, 1
        %s491 = scalar_lea.sflag [#allocation3], %s490
        %s492 = sand.u32 %s59, 1
        %s493 = smul.addr %s492, 64
        %s494 = scalar_lea.vmem [#allocation2], %s493
        %p495 = pneg %p72
        %p496 = pneg %p69
        %s497 = sand.u32 %s37, 1
        %s498 = scalar_lea.sflag [#allocation6], %s497
        %s499 = sand.u32 %s87, 1
        %s500 = smul.addr %s499, 64
        %s501 = scalar_lea.vmem [#allocation5], %s500
        %p502 = pneg %p100
        %p503 = pneg %p97
        %s504 = sand.u32 %s37, 1
        %s505 = scalar_lea.sflag [#allocation6], %s504
        %s506 = sand.u32 %s115, 1
        %s507 = smul.addr %s506, 64
        %s508 = scalar_lea.vmem [#allocation7], %s507
        %p509 = pneg %p128
        %p510 = pneg %p125
        %s511 = sand.u32 %s37, 1
        %s512 = scalar_lea.sflag [#allocation9], %s511
        %s513 = sand.u32 %s143, 1
        %s514 = smul.addr %s513, 64
        %s515 = scalar_lea.vmem [#allocation8], %s514
        %p516 = pneg %p156
        %p517 = pneg %p153
        %s518 = sand.u32 %s37, 1
        %s519 = scalar_lea.sflag [#allocation9], %s518
        %s520 = sand.u32 %s169, 1
        %s521 = smul.addr %s520, 64
        %s522 = scalar_lea.vmem [#allocation10], %s521
        %p523 = pneg %p182
        %p524 = pneg %p179
        %s525 = sand.u32 %s195, 1
        %s526 = scalar_lea.sflag [#allocation12], %s525
        %s527 = sand.u32 %s195, 1
        %s528 = smul.addr %s527, 64
        %s529 = scalar_lea.vmem [#allocation11], %s528
        %p530 = pneg %p208
        %p531 = pneg %p205
        %p532 = pneg %p236
        %p533 = pneg %p233
        %s534 = sand.u32 %s223, 1
        %s535 = scalar_lea.sflag [#allocation4], %s534
        %s536 = sand.u32 %s223, 1
        %s537 = smul.addr %s536, 64
        %s538 = scalar_lea.vmem [#allocation13], %s537
        %p539 = pneg %p264
        %p540 = pneg %p261
        %s541 = sand.u32 %s251, 1
        %s542 = scalar_lea.sflag [#allocation15], %s541
        %s543 = sand.u32 %s251, 1
        %s544 = smul.addr %s543, 64
        %s545 = scalar_lea.vmem [#allocation14], %s544
        %s546 = smul.u32 16, %s42
        %s547 = smul.u32 16, %s42
        %s548 = smul.u32 16, %s42
        %s549 = smul.u32 2, %s42
        %s550 = smul.u32 16, %s42
        %s551 = smul.u32 2, %s42
        %v553 = vld [vmem:[%s434] sm:$0xf]
        %v554 = vld [vmem:[%s434 + $0x4] sm:$0xf]
        %v555 = vld [vmem:[%s434 + $0x8] sm:$0xf]
        %v556 = vld [vmem:[%s434 + $0xc] sm:$0xf]
        %v557 = vld [vmem:[%s434 + $0x10] sm:$0xf]
        %v558 = vld [vmem:[%s434 + $0x14] sm:$0xf]
        %v559 = vld [vmem:[%s434 + $0x18] sm:$0xf]
        %v560 = vld [vmem:[%s434 + $0x1c] sm:$0xf]
        %v561 = vld [vmem:[%s434 + $0x20] sm:$0xf]
        %v562 = vld [vmem:[%s434 + $0x24] sm:$0xf]
        %v563 = vld [vmem:[%s434 + $0x28] sm:$0xf]
        %v564 = vld [vmem:[%s434 + $0x2c] sm:$0xf]
        %v565 = vld [vmem:[%s434 + $0x30] sm:$0xf]
        %v566 = vld [vmem:[%s434 + $0x34] sm:$0xf]
        %v567 = vld [vmem:[%s434 + $0x38] sm:$0xf]
        %v568 = vld [vmem:[%s434 + $0x3c] sm:$0xf]
        %v569 = vld [vmem:[%s444] sm:$0xf]
        %v570 = vld [vmem:[%s444 + $0x4] sm:$0xf]
        %v571 = vld [vmem:[%s444 + $0x8] sm:$0xf]
        %v572 = vld [vmem:[%s444 + $0xc] sm:$0xf]
        %v573 = vld [vmem:[%s444 + $0x10] sm:$0xf]
        %v574 = vld [vmem:[%s444 + $0x14] sm:$0xf]
        %v575 = vld [vmem:[%s444 + $0x18] sm:$0xf]
        %v576 = vld [vmem:[%s444 + $0x1c] sm:$0xf]
        %v577 = vld [vmem:[%s444 + $0x20] sm:$0xf]
        %v578 = vld [vmem:[%s444 + $0x24] sm:$0xf]
        %v579 = vld [vmem:[%s444 + $0x28] sm:$0xf]
        %v580 = vld [vmem:[%s444 + $0x2c] sm:$0xf]
        %v581 = vld [vmem:[%s444 + $0x30] sm:$0xf]
        %v582 = vld [vmem:[%s444 + $0x34] sm:$0xf]
        %v583 = vld [vmem:[%s444 + $0x38] sm:$0xf]
        %v584 = vld [vmem:[%s444 + $0x3c] sm:$0xf]
        %v585 = vld [vmem:[%s454] sm:$0xf]
        %v586 = vld [vmem:[%s454 + $0x4] sm:$0xf]
        %v587 = vld [vmem:[%s454 + $0x8] sm:$0xf]
        %v588 = vld [vmem:[%s454 + $0xc] sm:$0xf]
        %v589 = vld [vmem:[%s454 + $0x10] sm:$0xf]
        %v590 = vld [vmem:[%s454 + $0x14] sm:$0xf]
        %v591 = vld [vmem:[%s454 + $0x18] sm:$0xf]
        %v592 = vld [vmem:[%s454 + $0x1c] sm:$0xf]
        %v593 = vld [vmem:[%s454 + $0x20] sm:$0xf]
        %v594 = vld [vmem:[%s454 + $0x24] sm:$0xf]
        %v595 = vld [vmem:[%s454 + $0x28] sm:$0xf]
        %v596 = vld [vmem:[%s454 + $0x2c] sm:$0xf]
        %v597 = vld [vmem:[%s454 + $0x30] sm:$0xf]
        %v598 = vld [vmem:[%s454 + $0x34] sm:$0xf]
        %v599 = vld [vmem:[%s454 + $0x38] sm:$0xf]
        %v600 = vld [vmem:[%s454 + $0x3c] sm:$0xf]
        %v601 = vld [vmem:[%s464] sm:$0xf]
        %v602 = vld [vmem:[%s464 + $0x4] sm:$0xf]
        %v603 = vld [vmem:[%s464 + $0x8] sm:$0xf]
        %v604 = vld [vmem:[%s464 + $0xc] sm:$0xf]
        %v605 = vld [vmem:[%s464 + $0x10] sm:$0xf]
        %v606 = vld [vmem:[%s464 + $0x14] sm:$0xf]
        %v607 = vld [vmem:[%s464 + $0x18] sm:$0xf]
        %v608 = vld [vmem:[%s464 + $0x1c] sm:$0xf]
        %v609 = vld [vmem:[%s464 + $0x20] sm:$0xf]
        %v610 = vld [vmem:[%s464 + $0x24] sm:$0xf]
        %v611 = vld [vmem:[%s464 + $0x28] sm:$0xf]
        %v612 = vld [vmem:[%s464 + $0x2c] sm:$0xf]
        %v613 = vld [vmem:[%s464 + $0x30] sm:$0xf]
        %v614 = vld [vmem:[%s464 + $0x34] sm:$0xf]
        %v615 = vld [vmem:[%s464 + $0x38] sm:$0xf]
        %v616 = vld [vmem:[%s464 + $0x3c] sm:$0xf]
        %v617 = vld [vmem:[%s474] sm:$0xf]
        %v618 = vld [vmem:[%s474 + $0x4] sm:$0xf]
        %v619 = vld [vmem:[%s474 + $0x8] sm:$0xf]
        %v620 = vld [vmem:[%s474 + $0xc] sm:$0xf]
        %v621 = vld [vmem:[%s474 + $0x10] sm:$0xf]
        %v622 = vld [vmem:[%s474 + $0x14] sm:$0xf]
        %v623 = vld [vmem:[%s474 + $0x18] sm:$0xf]
        %v624 = vld [vmem:[%s474 + $0x1c] sm:$0xf]
        %v625 = vld [vmem:[%s474 + $0x20] sm:$0xf]
        %v626 = vld [vmem:[%s474 + $0x24] sm:$0xf]
        %v627 = vld [vmem:[%s474 + $0x28] sm:$0xf]
        %v628 = vld [vmem:[%s474 + $0x2c] sm:$0xf]
        %v629 = vld [vmem:[%s474 + $0x30] sm:$0xf]
        %v630 = vld [vmem:[%s474 + $0x34] sm:$0xf]
        %v631 = vld [vmem:[%s474 + $0x38] sm:$0xf]
        %v632 = vld [vmem:[%s474 + $0x3c] sm:$0xf]
        %v633 = vld [vmem:[%s484] sm:$0xf]
        %v634 = vld [vmem:[%s484 + $0x4] sm:$0xf]
        %v635 = vld [vmem:[%s484 + $0x8] sm:$0xf]
        %v636 = vld [vmem:[%s484 + $0xc] sm:$0xf]
        %v637 = vld [vmem:[%s484 + $0x10] sm:$0xf]
        %v638 = vld [vmem:[%s484 + $0x14] sm:$0xf]
        %v639 = vld [vmem:[%s484 + $0x18] sm:$0xf]
        %v640 = vld [vmem:[%s484 + $0x1c] sm:$0xf]
        %v641 = vld [vmem:[%s484 + $0x20] sm:$0xf]
        %v642 = vld [vmem:[%s484 + $0x24] sm:$0xf]
        %v643 = vld [vmem:[%s484 + $0x28] sm:$0xf]
        %v644 = vld [vmem:[%s484 + $0x2c] sm:$0xf]
        %v645 = vld [vmem:[%s484 + $0x30] sm:$0xf]
        %v646 = vld [vmem:[%s484 + $0x34] sm:$0xf]
        %v647 = vld [vmem:[%s484 + $0x38] sm:$0xf]
        %v648 = vld [vmem:[%s484 + $0x3c] sm:$0xf]
        %s649 = smul.u32 %s42, 16
        %650 = vmatpush.bf16.xpose.msra.mxu0 0
        %651 = vmatpush.bf16.xpose.msra.mxu0 0
        %652 = vmatpush.bf16.xpose.msra.mxu0 0
        %653 = vmatpush.bf16.xpose.msra.mxu0 0
        %654 = vmatpush.bf16.xpose.msra.mxu0 0
        %655 = vmatpush.bf16.xpose.msra.mxu0 0
        %656 = vmatpush.bf16.xpose.msra.mxu0 0
        %657 = vmatpush.bf16.xpose.msra.mxu0 %v569
        %658 = vmatmul.bf16.gmra.mxu0 %v553
        %v659 = vpop.f32.mrf.mxu0
        %v660 = vadd.f32 0.0, %v659
        %v661 = vpop.f32.mrf.mxu0
        %662 = vdwg.mxu0
        %663 = vmatpush.bf16.xpose.msra.mxu0 0
        %664 = vmatpush.bf16.xpose.msra.mxu0 0
        %665 = vmatpush.bf16.xpose.msra.mxu0 0
        %666 = vmatpush.bf16.xpose.msra.mxu0 0
        %667 = vmatpush.bf16.xpose.msra.mxu0 0
        %668 = vmatpush.bf16.xpose.msra.mxu0 0
        %669 = vmatpush.bf16.xpose.msra.mxu0 0
        %670 = vmatpush.bf16.xpose.msra.mxu0 %v570
        %671 = vmatmul.bf16.gmra.mxu0 %v554
        %v672 = vpop.f32.mrf.mxu0
        %v673 = vadd.f32 0.0, %v672
        %v674 = vpop.f32.mrf.mxu0
        %675 = vdwg.mxu0
        %676 = vmatpush.bf16.xpose.msra.mxu0 0
        %677 = vmatpush.bf16.xpose.msra.mxu0 0
        %678 = vmatpush.bf16.xpose.msra.mxu0 0
        %679 = vmatpush.bf16.xpose.msra.mxu0 0
        %680 = vmatpush.bf16.xpose.msra.mxu0 0
        %681 = vmatpush.bf16.xpose.msra.mxu0 0
        %682 = vmatpush.bf16.xpose.msra.mxu0 0
        %683 = vmatpush.bf16.xpose.msra.mxu0 %v571
        %684 = vmatmul.bf16.gmra.mxu0 %v555
        %v685 = vpop.f32.mrf.mxu0
        %v686 = vadd.f32 0.0, %v685
        %v687 = vpop.f32.mrf.mxu0
        %688 = vdwg.mxu0
        %689 = vmatpush.bf16.xpose.msra.mxu0 0
        %690 = vmatpush.bf16.xpose.msra.mxu0 0
        %691 = vmatpush.bf16.xpose.msra.mxu0 0
        %692 = vmatpush.bf16.xpose.msra.mxu0 0
        %693 = vmatpush.bf16.xpose.msra.mxu0 0
        %694 = vmatpush.bf16.xpose.msra.mxu0 0
        %695 = vmatpush.bf16.xpose.msra.mxu0 0
        %696 = vmatpush.bf16.xpose.msra.mxu0 %v572
        %697 = vmatmul.bf16.gmra.mxu0 %v556
        %v698 = vpop.f32.mrf.mxu0
        %v699 = vadd.f32 0.0, %v698
        %v700 = vpop.f32.mrf.mxu0
        %701 = vdwg.mxu0
        %702 = vmatpush.bf16.xpose.msra.mxu0 0
        %703 = vmatpush.bf16.xpose.msra.mxu0 0
        %704 = vmatpush.bf16.xpose.msra.mxu0 0
        %705 = vmatpush.bf16.xpose.msra.mxu0 0
        %706 = vmatpush.bf16.xpose.msra.mxu0 0
        %707 = vmatpush.bf16.xpose.msra.mxu0 0
        %708 = vmatpush.bf16.xpose.msra.mxu0 0
        %709 = vmatpush.bf16.xpose.msra.mxu0 %v573
        %710 = vmatmul.bf16.gmra.mxu0 %v557
        %v711 = vpop.f32.mrf.mxu0
        %v712 = vadd.f32 0.0, %v711
        %v713 = vpop.f32.mrf.mxu0
        %714 = vdwg.mxu0
        %715 = vmatpush.bf16.xpose.msra.mxu0 0
        %716 = vmatpush.bf16.xpose.msra.mxu0 0
        %717 = vmatpush.bf16.xpose.msra.mxu0 0
        %718 = vmatpush.bf16.xpose.msra.mxu0 0
        %719 = vmatpush.bf16.xpose.msra.mxu0 0
        %720 = vmatpush.bf16.xpose.msra.mxu0 0
        %721 = vmatpush.bf16.xpose.msra.mxu0 0
        %722 = vmatpush.bf16.xpose.msra.mxu0 %v574
        %723 = vmatmul.bf16.gmra.mxu0 %v558
        %v724 = vpop.f32.mrf.mxu0
        %v725 = vadd.f32 0.0, %v724
        %v726 = vpop.f32.mrf.mxu0
        %727 = vdwg.mxu0
        %728 = vmatpush.bf16.xpose.msra.mxu0 0
        %729 = vmatpush.bf16.xpose.msra.mxu0 0
        %730 = vmatpush.bf16.xpose.msra.mxu0 0
        %731 = vmatpush.bf16.xpose.msra.mxu0 0
        %732 = vmatpush.bf16.xpose.msra.mxu0 0
        %733 = vmatpush.bf16.xpose.msra.mxu0 0
        %734 = vmatpush.bf16.xpose.msra.mxu0 0
        %735 = vmatpush.bf16.xpose.msra.mxu0 %v575
        %736 = vmatmul.bf16.gmra.mxu0 %v559
        %v737 = vpop.f32.mrf.mxu0
        %v738 = vadd.f32 0.0, %v737
        %v739 = vpop.f32.mrf.mxu0
        %740 = vdwg.mxu0
        %741 = vmatpush.bf16.xpose.msra.mxu0 0
        %742 = vmatpush.bf16.xpose.msra.mxu0 0
        %743 = vmatpush.bf16.xpose.msra.mxu0 0
        %744 = vmatpush.bf16.xpose.msra.mxu0 0
        %745 = vmatpush.bf16.xpose.msra.mxu0 0
        %746 = vmatpush.bf16.xpose.msra.mxu0 0
        %747 = vmatpush.bf16.xpose.msra.mxu0 0
        %748 = vmatpush.bf16.xpose.msra.mxu0 %v576
        %749 = vmatmul.bf16.gmra.mxu0 %v560
        %v750 = vpop.f32.mrf.mxu0
        %v751 = vadd.f32 0.0, %v750
        %v752 = vpop.f32.mrf.mxu0
        %753 = vdwg.mxu0
        %754 = vmatpush.bf16.xpose.msra.mxu0 0
        %755 = vmatpush.bf16.xpose.msra.mxu0 0
        %756 = vmatpush.bf16.xpose.msra.mxu0 0
        %757 = vmatpush.bf16.xpose.msra.mxu0 0
        %758 = vmatpush.bf16.xpose.msra.mxu0 0
        %759 = vmatpush.bf16.xpose.msra.mxu0 0
        %760 = vmatpush.bf16.xpose.msra.mxu0 0
        %761 = vmatpush.bf16.xpose.msra.mxu0 %v577
        %762 = vmatmul.bf16.gmra.mxu0 %v561
        %v763 = vpop.f32.mrf.mxu0
        %v764 = vadd.f32 0.0, %v763
        %v765 = vpop.f32.mrf.mxu0
        %766 = vdwg.mxu0
        %767 = vmatpush.bf16.xpose.msra.mxu0 0
        %768 = vmatpush.bf16.xpose.msra.mxu0 0
        %769 = vmatpush.bf16.xpose.msra.mxu0 0
        %770 = vmatpush.bf16.xpose.msra.mxu0 0
        %771 = vmatpush.bf16.xpose.msra.mxu0 0
        %772 = vmatpush.bf16.xpose.msra.mxu0 0
        %773 = vmatpush.bf16.xpose.msra.mxu0 0
        %774 = vmatpush.bf16.xpose.msra.mxu0 %v578
        %775 = vmatmul.bf16.gmra.mxu0 %v562
        %v776 = vpop.f32.mrf.mxu0
        %v777 = vadd.f32 0.0, %v776
        %v778 = vpop.f32.mrf.mxu0
        %779 = vdwg.mxu0
        %780 = vmatpush.bf16.xpose.msra.mxu0 0
        %781 = vmatpush.bf16.xpose.msra.mxu0 0
        %782 = vmatpush.bf16.xpose.msra.mxu0 0
        %783 = vmatpush.bf16.xpose.msra.mxu0 0
        %784 = vmatpush.bf16.xpose.msra.mxu0 0
        %785 = vmatpush.bf16.xpose.msra.mxu0 0
        %786 = vmatpush.bf16.xpose.msra.mxu0 0
        %787 = vmatpush.bf16.xpose.msra.mxu0 %v579
        %788 = vmatmul.bf16.gmra.mxu0 %v563
        %v789 = vpop.f32.mrf.mxu0
        %v790 = vadd.f32 0.0, %v789
        %v791 = vpop.f32.mrf.mxu0
        %792 = vdwg.mxu0
        %793 = vmatpush.bf16.xpose.msra.mxu0 0
        %794 = vmatpush.bf16.xpose.msra.mxu0 0
        %795 = vmatpush.bf16.xpose.msra.mxu0 0
        %796 = vmatpush.bf16.xpose.msra.mxu0 0
        %797 = vmatpush.bf16.xpose.msra.mxu0 0
        %798 = vmatpush.bf16.xpose.msra.mxu0 0
        %799 = vmatpush.bf16.xpose.msra.mxu0 0
        %800 = vmatpush.bf16.xpose.msra.mxu0 %v580
        %801 = vmatmul.bf16.gmra.mxu0 %v564
        %v802 = vpop.f32.mrf.mxu0
        %v803 = vadd.f32 0.0, %v802
        %v804 = vpop.f32.mrf.mxu0
        %805 = vdwg.mxu0
        %806 = vmatpush.bf16.xpose.msra.mxu0 0
        %807 = vmatpush.bf16.xpose.msra.mxu0 0
        %808 = vmatpush.bf16.xpose.msra.mxu0 0
        %809 = vmatpush.bf16.xpose.msra.mxu0 0
        %810 = vmatpush.bf16.xpose.msra.mxu0 0
        %811 = vmatpush.bf16.xpose.msra.mxu0 0
        %812 = vmatpush.bf16.xpose.msra.mxu0 0
        %813 = vmatpush.bf16.xpose.msra.mxu0 %v581
        %814 = vmatmul.bf16.gmra.mxu0 %v565
        %v815 = vpop.f32.mrf.mxu0
        %v816 = vadd.f32 0.0, %v815
        %v817 = vpop.f32.mrf.mxu0
        %818 = vdwg.mxu0
        %819 = vmatpush.bf16.xpose.msra.mxu0 0
        %820 = vmatpush.bf16.xpose.msra.mxu0 0
        %821 = vmatpush.bf16.xpose.msra.mxu0 0
        %822 = vmatpush.bf16.xpose.msra.mxu0 0
        %823 = vmatpush.bf16.xpose.msra.mxu0 0
        %824 = vmatpush.bf16.xpose.msra.mxu0 0
        %825 = vmatpush.bf16.xpose.msra.mxu0 0
        %826 = vmatpush.bf16.xpose.msra.mxu0 %v582
        %827 = vmatmul.bf16.gmra.mxu0 %v566
        %v828 = vpop.f32.mrf.mxu0
        %v829 = vadd.f32 0.0, %v828
        %v830 = vpop.f32.mrf.mxu0
        %831 = vdwg.mxu0
        %832 = vmatpush.bf16.xpose.msra.mxu0 0
        %833 = vmatpush.bf16.xpose.msra.mxu0 0
        %834 = vmatpush.bf16.xpose.msra.mxu0 0
        %835 = vmatpush.bf16.xpose.msra.mxu0 0
        %836 = vmatpush.bf16.xpose.msra.mxu0 0
        %837 = vmatpush.bf16.xpose.msra.mxu0 0
        %838 = vmatpush.bf16.xpose.msra.mxu0 0
        %839 = vmatpush.bf16.xpose.msra.mxu0 %v583
        %840 = vmatmul.bf16.gmra.mxu0 %v567
        %v841 = vpop.f32.mrf.mxu0
        %v842 = vadd.f32 0.0, %v841
        %v843 = vpop.f32.mrf.mxu0
        %844 = vdwg.mxu0
        %845 = vmatpush.bf16.xpose.msra.mxu0 0
        %846 = vmatpush.bf16.xpose.msra.mxu0 0
        %847 = vmatpush.bf16.xpose.msra.mxu0 0
        %848 = vmatpush.bf16.xpose.msra.mxu0 0
        %849 = vmatpush.bf16.xpose.msra.mxu0 0
        %850 = vmatpush.bf16.xpose.msra.mxu0 0
        %851 = vmatpush.bf16.xpose.msra.mxu0 0
        %852 = vmatpush.bf16.xpose.msra.mxu0 %v584
        %853 = vmatmul.bf16.gmra.mxu0 %v568
        %v854 = vpop.f32.mrf.mxu0
        %v855 = vadd.f32 0.0, %v854
        %v856 = vpop.f32.mrf.mxu0
        %857 = vdwg.mxu0
        %v860 = vunpack.c.l.b16 %v601
        %v861 = vunpack.c.l.b16 %v602
        %v862 = vpack.c.b16 %v861, %v860
        %v866 = vunpack.c.l.b16 %v617
        %v867 = vunpack.c.l.b16 %v618
        %v868 = vpack.c.b16 %v867, %v866
        %870 = vmatpush.bf16.xpose.msra.mxu0 0
        %871 = vmatpush.bf16.xpose.msra.mxu0 0
        %872 = vmatpush.bf16.xpose.msra.mxu0 0
        %873 = vmatpush.bf16.xpose.msra.mxu0 0
        %874 = vmatpush.bf16.xpose.msra.mxu0 0
        %875 = vmatpush.bf16.xpose.msra.mxu0 0
        %876 = vmatpush.bf16.xpose.msra.mxu0 0
        %877 = vmatpush.bf16.xpose.msra.mxu0 %v868
        %878 = vmatmul.bf16.gmra.mxu0 %v862
        %v879 = vpop.f32.mrf.mxu0
        %v880 = vadd.f32 0.0, %v879
        %v881 = vpop.f32.mrf.mxu0
        %v882 = vadd.f32 0.0, %v881
        %883 = vdwg.mxu0
        %v886 = vunpack.c.l.b16 %v603
        %v887 = vunpack.c.l.b16 %v604
        %v888 = vpack.c.b16 %v887, %v886
        %v892 = vunpack.c.l.b16 %v619
        %v893 = vunpack.c.l.b16 %v620
        %v894 = vpack.c.b16 %v893, %v892
        %896 = vmatpush.bf16.xpose.msra.mxu0 0
        %897 = vmatpush.bf16.xpose.msra.mxu0 0
        %898 = vmatpush.bf16.xpose.msra.mxu0 0
        %899 = vmatpush.bf16.xpose.msra.mxu0 0
        %900 = vmatpush.bf16.xpose.msra.mxu0 0
        %901 = vmatpush.bf16.xpose.msra.mxu0 0
        %902 = vmatpush.bf16.xpose.msra.mxu0 0
        %903 = vmatpush.bf16.xpose.msra.mxu0 %v894
        %904 = vmatmul.bf16.gmra.mxu0 %v888
        %v905 = vpop.f32.mrf.mxu0
        %v906 = vadd.f32 0.0, %v905
        %v907 = vpop.f32.mrf.mxu0
        %v908 = vadd.f32 0.0, %v907
        %909 = vdwg.mxu0
        %v912 = vunpack.c.l.b16 %v605
        %v913 = vunpack.c.l.b16 %v606
        %v914 = vpack.c.b16 %v913, %v912
        %v918 = vunpack.c.l.b16 %v621
        %v919 = vunpack.c.l.b16 %v622
        %v920 = vpack.c.b16 %v919, %v918
        %922 = vmatpush.bf16.xpose.msra.mxu0 0
        %923 = vmatpush.bf16.xpose.msra.mxu0 0
        %924 = vmatpush.bf16.xpose.msra.mxu0 0
        %925 = vmatpush.bf16.xpose.msra.mxu0 0
        %926 = vmatpush.bf16.xpose.msra.mxu0 0
        %927 = vmatpush.bf16.xpose.msra.mxu0 0
        %928 = vmatpush.bf16.xpose.msra.mxu0 0
        %929 = vmatpush.bf16.xpose.msra.mxu0 %v920
        %930 = vmatmul.bf16.gmra.mxu0 %v914
        %v931 = vpop.f32.mrf.mxu0
        %v932 = vadd.f32 0.0, %v931
        %v933 = vpop.f32.mrf.mxu0
        %v934 = vadd.f32 0.0, %v933
        %935 = vdwg.mxu0
        %v938 = vunpack.c.l.b16 %v607
        %v939 = vunpack.c.l.b16 %v608
        %v940 = vpack.c.b16 %v939, %v938
        %v944 = vunpack.c.l.b16 %v623
        %v945 = vunpack.c.l.b16 %v624
        %v946 = vpack.c.b16 %v945, %v944
        %948 = vmatpush.bf16.xpose.msra.mxu0 0
        %949 = vmatpush.bf16.xpose.msra.mxu0 0
        %950 = vmatpush.bf16.xpose.msra.mxu0 0
        %951 = vmatpush.bf16.xpose.msra.mxu0 0
        %952 = vmatpush.bf16.xpose.msra.mxu0 0
        %953 = vmatpush.bf16.xpose.msra.mxu0 0
        %954 = vmatpush.bf16.xpose.msra.mxu0 0
        %955 = vmatpush.bf16.xpose.msra.mxu0 %v946
        %956 = vmatmul.bf16.gmra.mxu0 %v940
        %v957 = vpop.f32.mrf.mxu0
        %v958 = vadd.f32 0.0, %v957
        %v959 = vpop.f32.mrf.mxu0
        %v960 = vadd.f32 0.0, %v959
        %961 = vdwg.mxu0
        %v964 = vunpack.c.l.b16 %v609
        %v965 = vunpack.c.l.b16 %v610
        %v966 = vpack.c.b16 %v965, %v964
        %v970 = vunpack.c.l.b16 %v625
        %v971 = vunpack.c.l.b16 %v626
        %v972 = vpack.c.b16 %v971, %v970
        %974 = vmatpush.bf16.xpose.msra.mxu0 0
        %975 = vmatpush.bf16.xpose.msra.mxu0 0
        %976 = vmatpush.bf16.xpose.msra.mxu0 0
        %977 = vmatpush.bf16.xpose.msra.mxu0 0
        %978 = vmatpush.bf16.xpose.msra.mxu0 0
        %979 = vmatpush.bf16.xpose.msra.mxu0 0
        %980 = vmatpush.bf16.xpose.msra.mxu0 0
        %981 = vmatpush.bf16.xpose.msra.mxu0 %v972
        %982 = vmatmul.bf16.gmra.mxu0 %v966
        %v983 = vpop.f32.mrf.mxu0
        %v984 = vadd.f32 0.0, %v983
        %v985 = vpop.f32.mrf.mxu0
        %v986 = vadd.f32 0.0, %v985
        %987 = vdwg.mxu0
        %v990 = vunpack.c.l.b16 %v611
        %v991 = vunpack.c.l.b16 %v612
        %v992 = vpack.c.b16 %v991, %v990
        %v996 = vunpack.c.l.b16 %v627
        %v997 = vunpack.c.l.b16 %v628
        %v998 = vpack.c.b16 %v997, %v996
        %1000 = vmatpush.bf16.xpose.msra.mxu0 0
        %1001 = vmatpush.bf16.xpose.msra.mxu0 0
        %1002 = vmatpush.bf16.xpose.msra.mxu0 0
        %1003 = vmatpush.bf16.xpose.msra.mxu0 0
        %1004 = vmatpush.bf16.xpose.msra.mxu0 0
        %1005 = vmatpush.bf16.xpose.msra.mxu0 0
        %1006 = vmatpush.bf16.xpose.msra.mxu0 0
        %1007 = vmatpush.bf16.xpose.msra.mxu0 %v998
        %1008 = vmatmul.bf16.gmra.mxu0 %v992
        %v1009 = vpop.f32.mrf.mxu0
        %v1010 = vadd.f32 0.0, %v1009
        %v1011 = vpop.f32.mrf.mxu0
        %v1012 = vadd.f32 0.0, %v1011
        %1013 = vdwg.mxu0
        %v1016 = vunpack.c.l.b16 %v613
        %v1017 = vunpack.c.l.b16 %v614
        %v1018 = vpack.c.b16 %v1017, %v1016
        %v1022 = vunpack.c.l.b16 %v629
        %v1023 = vunpack.c.l.b16 %v630
        %v1024 = vpack.c.b16 %v1023, %v1022
        %1026 = vmatpush.bf16.xpose.msra.mxu0 0
        %1027 = vmatpush.bf16.xpose.msra.mxu0 0
        %1028 = vmatpush.bf16.xpose.msra.mxu0 0
        %1029 = vmatpush.bf16.xpose.msra.mxu0 0
        %1030 = vmatpush.bf16.xpose.msra.mxu0 0
        %1031 = vmatpush.bf16.xpose.msra.mxu0 0
        %1032 = vmatpush.bf16.xpose.msra.mxu0 0
        %1033 = vmatpush.bf16.xpose.msra.mxu0 %v1024
        %1034 = vmatmul.bf16.gmra.mxu0 %v1018
        %v1035 = vpop.f32.mrf.mxu0
        %v1036 = vadd.f32 0.0, %v1035
        %v1037 = vpop.f32.mrf.mxu0
        %v1038 = vadd.f32 0.0, %v1037
        %1039 = vdwg.mxu0
        %v1042 = vunpack.c.l.b16 %v615
        %v1043 = vunpack.c.l.b16 %v616
        %v1044 = vpack.c.b16 %v1043, %v1042
        %v1048 = vunpack.c.l.b16 %v631
        %v1049 = vunpack.c.l.b16 %v632
        %v1050 = vpack.c.b16 %v1049, %v1048
        %1052 = vmatpush.bf16.xpose.msra.mxu0 0
        %1053 = vmatpush.bf16.xpose.msra.mxu0 0
        %1054 = vmatpush.bf16.xpose.msra.mxu0 0
        %1055 = vmatpush.bf16.xpose.msra.mxu0 0
        %1056 = vmatpush.bf16.xpose.msra.mxu0 0
        %1057 = vmatpush.bf16.xpose.msra.mxu0 0
        %1058 = vmatpush.bf16.xpose.msra.mxu0 0
        %1059 = vmatpush.bf16.xpose.msra.mxu0 %v1050
        %1060 = vmatmul.bf16.gmra.mxu0 %v1044
        %v1061 = vpop.f32.mrf.mxu0
        %v1062 = vadd.f32 0.0, %v1061
        %v1063 = vpop.f32.mrf.mxu0
        %v1064 = vadd.f32 0.0, %v1063
        %1065 = vdwg.mxu0
        %v1066 = vlaneseq
        %v1067 = vand.u32 %v1066, 127
        %v1068 = vlaneseq
        %v1069 = vshrl.u32 %v1068, 7
        %v1070 = vadd.s32 %v1069, 8
        %v1071 = vstv %s649
        %v1072 = vadd.s32 %v1069, %v1071
        %v1073 = vadd.s32 %v1070, %v1071
        %vm1074 = vcmp.eq.s32.totalorder %v1067, %v1072
        %vm1075 = vcmp.eq.s32.totalorder %v1067, %v1073
        %v1076 = vsel %vm1074, 1, 0
        %v1077 = vsel %vm1075, 1, 0
        %vm1078 = vcmp.eq.s32.totalorder %v1076, 1
        %vm1079 = vcmp.eq.s32.totalorder %v1077, 1
        %v1080 = vsel %vm1078, -1e+30, %v880
        %v1081 = vsel %vm1079, -1e+30, %v882
        %v1082 = vsel %vm1078, -1e+30, %v906
        %v1083 = vsel %vm1079, -1e+30, %v908
        %v1084 = vsel %vm1078, -1e+30, %v932
        %v1085 = vsel %vm1079, -1e+30, %v934
        %v1086 = vsel %vm1078, -1e+30, %v958
        %v1087 = vsel %vm1079, -1e+30, %v960
        %v1088 = vsel %vm1078, -1e+30, %v984
        %v1089 = vsel %vm1079, -1e+30, %v986
        %v1090 = vsel %vm1078, -1e+30, %v1010
        %v1091 = vsel %vm1079, -1e+30, %v1012
        %v1092 = vsel %vm1078, -1e+30, %v1036
        %v1093 = vsel %vm1079, -1e+30, %v1038
        %v1094 = vsel %vm1078, -1e+30, %v1062
        %v1095 = vsel %vm1079, -1e+30, %v1064
        %vm1096 = vcmp.eq.s32.totalorder %v1069, %v1067
        %vm1097 = vcmp.eq.s32.totalorder %v1070, %v1067
        %v1098 = vsel %vm1096, 1, 0
        %v1099 = vsel %vm1097, 1, 0
        %v1100 = vcvt.s32.f32 %v1098
        %v1101 = vcvt.s32.f32 %v1099
        %vm1102 = vcmask 64512
        %v1103 = vsel %vm1102, %v660, -inf
        %1104 = vmax.xlane.f32.xlu0 %v1103
        %v1105 = vpop.xlane.xlu0 %1104
        %v1106 = vsel %vm1102, %v673, -inf
        %1107 = vmax.xlane.f32.xlu0 %v1106
        %v1108 = vpop.xlane.xlu0 %1107
        %v1109 = vsel %vm1102, %v686, -inf
        %1110 = vmax.xlane.f32.xlu0 %v1109
        %v1111 = vpop.xlane.xlu0 %1110
        %v1112 = vsel %vm1102, %v699, -inf
        %1113 = vmax.xlane.f32.xlu0 %v1112
        %v1114 = vpop.xlane.xlu0 %1113
        %v1115 = vsel %vm1102, %v712, -inf
        %1116 = vmax.xlane.f32.xlu0 %v1115
        %v1117 = vpop.xlane.xlu0 %1116
        %v1118 = vsel %vm1102, %v725, -inf
        %1119 = vmax.xlane.f32.xlu0 %v1118
        %v1120 = vpop.xlane.xlu0 %1119
        %v1121 = vsel %vm1102, %v738, -inf
        %1122 = vmax.xlane.f32.xlu0 %v1121
        %v1123 = vpop.xlane.xlu0 %1122
        %v1124 = vsel %vm1102, %v751, -inf
        %1125 = vmax.xlane.f32.xlu0 %v1124
        %v1126 = vpop.xlane.xlu0 %1125
        %v1127 = vsel %vm1102, %v764, -inf
        %1128 = vmax.xlane.f32.xlu0 %v1127
        %v1129 = vpop.xlane.xlu0 %1128
        %v1130 = vsel %vm1102, %v777, -inf
        %1131 = vmax.xlane.f32.xlu0 %v1130
        %v1132 = vpop.xlane.xlu0 %1131
        %v1133 = vsel %vm1102, %v790, -inf
        %1134 = vmax.xlane.f32.xlu0 %v1133
        %v1135 = vpop.xlane.xlu0 %1134
        %v1136 = vsel %vm1102, %v803, -inf
        %1137 = vmax.xlane.f32.xlu0 %v1136
        %v1138 = vpop.xlane.xlu0 %1137
        %v1139 = vsel %vm1102, %v816, -inf
        %1140 = vmax.xlane.f32.xlu0 %v1139
        %v1141 = vpop.xlane.xlu0 %1140
        %v1142 = vsel %vm1102, %v829, -inf
        %1143 = vmax.xlane.f32.xlu0 %v1142
        %v1144 = vpop.xlane.xlu0 %1143
        %v1145 = vsel %vm1102, %v842, -inf
        %1146 = vmax.xlane.f32.xlu0 %v1145
        %v1147 = vpop.xlane.xlu0 %1146
        %v1148 = vsel %vm1102, %v855, -inf
        %1149 = vmax.xlane.f32.xlu0 %v1148
        %v1150 = vpop.xlane.xlu0 %1149
        %vm1151 = vcmask 130048
        %v1152 = vsel %vm1151, %v1080, -inf
        %1153 = vmax.xlane.f32.xlu0 %v1152
        %v1154 = vpop.xlane.xlu0 %1153
        %v1155 = vsel %vm1151, %v1081, -inf
        %1156 = vmax.xlane.f32.xlu0 %v1155
        %v1157 = vpop.xlane.xlu0 %1156
        %v1158 = vsel %vm1151, %v1082, -inf
        %1159 = vmax.xlane.f32.xlu0 %v1158
        %v1160 = vpop.xlane.xlu0 %1159
        %v1161 = vsel %vm1151, %v1083, -inf
        %1162 = vmax.xlane.f32.xlu0 %v1161
        %v1163 = vpop.xlane.xlu0 %1162
        %v1164 = vsel %vm1151, %v1084, -inf
        %1165 = vmax.xlane.f32.xlu0 %v1164
        %v1166 = vpop.xlane.xlu0 %1165
        %v1167 = vsel %vm1151, %v1085, -inf
        %1168 = vmax.xlane.f32.xlu0 %v1167
        %v1169 = vpop.xlane.xlu0 %1168
        %v1170 = vsel %vm1151, %v1086, -inf
        %1171 = vmax.xlane.f32.xlu0 %v1170
        %v1172 = vpop.xlane.xlu0 %1171
        %v1173 = vsel %vm1151, %v1087, -inf
        %1174 = vmax.xlane.f32.xlu0 %v1173
        %v1175 = vpop.xlane.xlu0 %1174
        %v1176 = vsel %vm1151, %v1088, -inf
        %1177 = vmax.xlane.f32.xlu0 %v1176
        %v1178 = vpop.xlane.xlu0 %1177
        %v1179 = vsel %vm1151, %v1089, -inf
        %1180 = vmax.xlane.f32.xlu0 %v1179
        %v1181 = vpop.xlane.xlu0 %1180
        %v1182 = vsel %vm1151, %v1090, -inf
        %1183 = vmax.xlane.f32.xlu0 %v1182
        %v1184 = vpop.xlane.xlu0 %1183
        %v1185 = vsel %vm1151, %v1091, -inf
        %1186 = vmax.xlane.f32.xlu0 %v1185
        %v1187 = vpop.xlane.xlu0 %1186
        %v1188 = vsel %vm1151, %v1092, -inf
        %1189 = vmax.xlane.f32.xlu0 %v1188
        %v1190 = vpop.xlane.xlu0 %1189
        %v1191 = vsel %vm1151, %v1093, -inf
        %1192 = vmax.xlane.f32.xlu0 %v1191
        %v1193 = vpop.xlane.xlu0 %1192
        %v1194 = vsel %vm1151, %v1094, -inf
        %1195 = vmax.xlane.f32.xlu0 %v1194
        %v1196 = vpop.xlane.xlu0 %1195
        %v1197 = vsel %vm1151, %v1095, -inf
        %1198 = vmax.xlane.f32.xlu0 %v1197
        %v1199 = vpop.xlane.xlu0 %1198
        %v1216 = vperm.slane %v1154, %v1067
        %v1217 = vadd.s32 %v1067, 4294967288
        %v1218 = vperm.slane %v1157, %v1217
        %vm1219 = vcmask 130112
        %v1220 = vsel %vm1219, %v1218, %v1216
        %v1221 = vperm.slane %v1160, %v1067
        %v1222 = vperm.slane %v1163, %v1217
        %v1223 = vsel %vm1219, %v1222, %v1221
        %v1224 = vperm.slane %v1166, %v1067
        %v1225 = vperm.slane %v1169, %v1217
        %v1226 = vsel %vm1219, %v1225, %v1224
        %v1227 = vperm.slane %v1172, %v1067
        %v1228 = vperm.slane %v1175, %v1217
        %v1229 = vsel %vm1219, %v1228, %v1227
        %v1230 = vperm.slane %v1178, %v1067
        %v1231 = vperm.slane %v1181, %v1217
        %v1232 = vsel %vm1219, %v1231, %v1230
        %v1233 = vperm.slane %v1184, %v1067
        %v1234 = vperm.slane %v1187, %v1217
        %v1235 = vsel %vm1219, %v1234, %v1233
        %v1236 = vperm.slane %v1190, %v1067
        %v1237 = vperm.slane %v1193, %v1217
        %v1238 = vsel %vm1219, %v1237, %v1236
        %v1239 = vperm.slane %v1196, %v1067
        %v1240 = vperm.slane %v1199, %v1217
        %v1241 = vsel %vm1219, %v1240, %v1239
        %vm1242 = vcmask 1041409
        %v1243 = vsel %vm1242, %v1223, %v1220
        %vm1244 = vcmask 1042434
        %v1245 = vsel %vm1244, %v1226, %v1243
        %vm1246 = vcmask 1043459
        %v1247 = vsel %vm1246, %v1229, %v1245
        %vm1248 = vcmask 1044484
        %v1249 = vsel %vm1248, %v1232, %v1247
        %vm1250 = vcmask 1045509
        %v1251 = vsel %vm1250, %v1235, %v1249
        %vm1252 = vcmask 1046534
        %v1253 = vsel %vm1252, %v1238, %v1251
        %vm1254 = vcmask 1047559
        %v1255 = vsel %vm1254, %v1241, %v1253
        %v1257 = vsel %vm1151, %v1100, 0
        %v1260 = vsel %vm1151, %v1101, 0
        %v1262 = vsel %vm1151, %v1255, 0
        %1264 = vmatpush.xpose.msra.mxu0 0.0
        %1265 = vmatpush.xpose.msra.mxu0 0.0
        %1266 = vmatpush.xpose.msra.mxu0 0.0
        %1267 = vmatpush.xpose.msra.mxu0 0.0
        %1268 = vmatpush.xpose.msra.mxu0 0.0
        %1269 = vmatpush.xpose.msra.mxu0 0.0
        %1270 = vmatpush.xpose.msra.mxu0 0.0
        %1271 = vmatpush.xpose.msra.mxu0 0.0
        %1272 = vmatpush.xpose.msra.mxu0 0.0
        %1273 = vmatpush.xpose.msra.mxu0 0.0
        %1274 = vmatpush.xpose.msra.mxu0 0.0
        %1275 = vmatpush.xpose.msra.mxu0 0.0
        %1276 = vmatpush.xpose.msra.mxu0 0.0
        %1277 = vmatpush.xpose.msra.mxu0 0.0
        %1278 = vmatpush.xpose.msra.mxu0 0.0
        %1279 = vmatpush.xpose.msra.mxu0 %v1262
        %1280 = vmatmul.f32.gmra.mxu0 %v1257
        %v1281 = vpop.f32.mrf.mxu0
        %v1282 = vadd.f32 0.0, %v1281
        %1283 = vmatmul.f32.gmra.mxu0 %v1260
        %v1284 = vpop.f32.mrf.mxu0
        %v1285 = vadd.f32 0.0, %v1284
        %1286 = vdwg.mxu0
        %v1289 = vperm.slane %v1282, 0
        %v1290 = vlaneseq
        %v1291 = vshrl.u32 %v1290, 7
        %1293 = vset.pattern.permute.xlu0 %v1291
        %1294 = vperm.xlu0 %1293, %v1289
        %v1295 = vpop.permute.xlu0 %1294
        %v1296 = vperm.slane %v1282, 1
        %v1297 = vlaneseq
        %v1298 = vshrl.u32 %v1297, 7
        %1300 = vset.pattern.permute.xlu0 %v1298
        %1301 = vperm.xlu0 %1300, %v1296
        %v1302 = vpop.permute.xlu0 %1301
        %v1303 = vperm.slane %v1282, 2
        %v1304 = vlaneseq
        %v1305 = vshrl.u32 %v1304, 7
        %1307 = vset.pattern.permute.xlu0 %v1305
        %1308 = vperm.xlu0 %1307, %v1303
        %v1309 = vpop.permute.xlu0 %1308
        %v1310 = vperm.slane %v1282, 3
        %v1311 = vlaneseq
        %v1312 = vshrl.u32 %v1311, 7
        %1314 = vset.pattern.permute.xlu0 %v1312
        %1315 = vperm.xlu0 %1314, %v1310
        %v1316 = vpop.permute.xlu0 %1315
        %v1317 = vperm.slane %v1282, 4
        %v1318 = vlaneseq
        %v1319 = vshrl.u32 %v1318, 7
        %1321 = vset.pattern.permute.xlu0 %v1319
        %1322 = vperm.xlu0 %1321, %v1317
        %v1323 = vpop.permute.xlu0 %1322
        %v1324 = vperm.slane %v1282, 5
        %v1325 = vlaneseq
        %v1326 = vshrl.u32 %v1325, 7
        %1328 = vset.pattern.permute.xlu0 %v1326
        %1329 = vperm.xlu0 %1328, %v1324
        %v1330 = vpop.permute.xlu0 %1329
        %v1331 = vperm.slane %v1282, 6
        %v1332 = vlaneseq
        %v1333 = vshrl.u32 %v1332, 7
        %1335 = vset.pattern.permute.xlu0 %v1333
        %1336 = vperm.xlu0 %1335, %v1331
        %v1337 = vpop.permute.xlu0 %1336
        %v1338 = vperm.slane %v1282, 7
        %v1339 = vlaneseq
        %v1340 = vshrl.u32 %v1339, 7
        %1342 = vset.pattern.permute.xlu0 %v1340
        %1343 = vperm.xlu0 %1342, %v1338
        %v1344 = vpop.permute.xlu0 %1343
        %v1345 = vperm.slane %v1285, 0
        %v1346 = vlaneseq
        %v1347 = vshrl.u32 %v1346, 7
        %1349 = vset.pattern.permute.xlu0 %v1347
        %1350 = vperm.xlu0 %1349, %v1345
        %v1351 = vpop.permute.xlu0 %1350
        %v1352 = vperm.slane %v1285, 1
        %v1353 = vlaneseq
        %v1354 = vshrl.u32 %v1353, 7
        %1356 = vset.pattern.permute.xlu0 %v1354
        %1357 = vperm.xlu0 %1356, %v1352
        %v1358 = vpop.permute.xlu0 %1357
        %v1359 = vperm.slane %v1285, 2
        %v1360 = vlaneseq
        %v1361 = vshrl.u32 %v1360, 7
        %1363 = vset.pattern.permute.xlu0 %v1361
        %1364 = vperm.xlu0 %1363, %v1359
        %v1365 = vpop.permute.xlu0 %1364
        %v1366 = vperm.slane %v1285, 3
        %v1367 = vlaneseq
        %v1368 = vshrl.u32 %v1367, 7
        %1370 = vset.pattern.permute.xlu0 %v1368
        %1371 = vperm.xlu0 %1370, %v1366
        %v1372 = vpop.permute.xlu0 %1371
        %v1373 = vperm.slane %v1285, 4
        %v1374 = vlaneseq
        %v1375 = vshrl.u32 %v1374, 7
        %1377 = vset.pattern.permute.xlu0 %v1375
        %1378 = vperm.xlu0 %1377, %v1373
        %v1379 = vpop.permute.xlu0 %1378
        %v1380 = vperm.slane %v1285, 5
        %v1381 = vlaneseq
        %v1382 = vshrl.u32 %v1381, 7
        %1384 = vset.pattern.permute.xlu0 %v1382
        %1385 = vperm.xlu0 %1384, %v1380
        %v1386 = vpop.permute.xlu0 %1385
        %v1387 = vperm.slane %v1285, 6
        %v1388 = vlaneseq
        %v1389 = vshrl.u32 %v1388, 7
        %1391 = vset.pattern.permute.xlu0 %v1389
        %1392 = vperm.xlu0 %1391, %v1387
        %v1393 = vpop.permute.xlu0 %1392
        %v1394 = vperm.slane %v1285, 7
        %v1395 = vlaneseq
        %v1396 = vshrl.u32 %v1395, 7
        %1398 = vset.pattern.permute.xlu0 %v1396
        %1399 = vperm.xlu0 %1398, %v1394
        %v1400 = vpop.permute.xlu0 %1399
        %v1417 = vmax.f32 %v1105, %v1295
        %v1418 = vmax.f32 %v1108, %v1302
        %v1419 = vmax.f32 %v1111, %v1309
        %v1420 = vmax.f32 %v1114, %v1316
        %v1421 = vmax.f32 %v1117, %v1323
        %v1422 = vmax.f32 %v1120, %v1330
        %v1423 = vmax.f32 %v1123, %v1337
        %v1424 = vmax.f32 %v1126, %v1344
        %v1425 = vmax.f32 %v1129, %v1351
        %v1426 = vmax.f32 %v1132, %v1358
        %v1427 = vmax.f32 %v1135, %v1365
        %v1428 = vmax.f32 %v1138, %v1372
        %v1429 = vmax.f32 %v1141, %v1379
        %v1430 = vmax.f32 %v1144, %v1386
        %v1431 = vmax.f32 %v1147, %v1393
        %v1432 = vmax.f32 %v1150, %v1400
        %1449 = vset.pattern.permute.xlu0 0
        %1450 = vperm.xlu0 %1449, %v1417
        %v1451 = vpop.permute.xlu0 %1450
        %1452 = vset.pattern.permute.xlu0 0
        %1453 = vperm.xlu0 %1452, %v1418
        %v1454 = vpop.permute.xlu0 %1453
        %1455 = vset.pattern.permute.xlu0 0
        %1456 = vperm.xlu0 %1455, %v1419
        %v1457 = vpop.permute.xlu0 %1456
        %1458 = vset.pattern.permute.xlu0 0
        %1459 = vperm.xlu0 %1458, %v1420
        %v1460 = vpop.permute.xlu0 %1459
        %1461 = vset.pattern.permute.xlu0 0
        %1462 = vperm.xlu0 %1461, %v1421
        %v1463 = vpop.permute.xlu0 %1462
        %1464 = vset.pattern.permute.xlu0 0
        %1465 = vperm.xlu0 %1464, %v1422
        %v1466 = vpop.permute.xlu0 %1465
        %1467 = vset.pattern.permute.xlu0 0
        %1468 = vperm.xlu0 %1467, %v1423
        %v1469 = vpop.permute.xlu0 %1468
        %1470 = vset.pattern.permute.xlu0 0
        %1471 = vperm.xlu0 %1470, %v1424
        %v1472 = vpop.permute.xlu0 %1471
        %1473 = vset.pattern.permute.xlu0 0
        %1474 = vperm.xlu0 %1473, %v1425
        %v1475 = vpop.permute.xlu0 %1474
        %1476 = vset.pattern.permute.xlu0 0
        %1477 = vperm.xlu0 %1476, %v1426
        %v1478 = vpop.permute.xlu0 %1477
        %1479 = vset.pattern.permute.xlu0 0
        %1480 = vperm.xlu0 %1479, %v1427
        %v1481 = vpop.permute.xlu0 %1480
        %1482 = vset.pattern.permute.xlu0 0
        %1483 = vperm.xlu0 %1482, %v1428
        %v1484 = vpop.permute.xlu0 %1483
        %1485 = vset.pattern.permute.xlu0 0
        %1486 = vperm.xlu0 %1485, %v1429
        %v1487 = vpop.permute.xlu0 %1486
        %1488 = vset.pattern.permute.xlu0 0
        %1489 = vperm.xlu0 %1488, %v1430
        %v1490 = vpop.permute.xlu0 %1489
        %1491 = vset.pattern.permute.xlu0 0
        %1492 = vperm.xlu0 %1491, %v1431
        %v1493 = vpop.permute.xlu0 %1492
        %1494 = vset.pattern.permute.xlu0 0
        %1495 = vperm.xlu0 %1494, %v1432
        %v1496 = vpop.permute.xlu0 %1495
        %v1497 = vperm.slane %v1451, %v1067
        %v1498 = vperm.slane %v1454, %v1067
        %v1499 = vperm.slane %v1457, %v1067
        %v1500 = vperm.slane %v1460, %v1067
        %v1501 = vperm.slane %v1463, %v1067
        %v1502 = vperm.slane %v1466, %v1067
        %v1503 = vperm.slane %v1469, %v1067
        %v1504 = vperm.slane %v1472, %v1067
        %v1505 = vperm.slane %v1475, %v1067
        %v1506 = vperm.slane %v1478, %v1067
        %v1507 = vperm.slane %v1481, %v1067
        %v1508 = vperm.slane %v1484, %v1067
        %v1509 = vperm.slane %v1487, %v1067
        %v1510 = vperm.slane %v1490, %v1067
        %v1511 = vperm.slane %v1493, %v1067
        %v1512 = vperm.slane %v1496, %v1067
        %v1513 = vsel %vm1242, %v1498, %v1497
        %v1514 = vsel %vm1244, %v1499, %v1513
        %v1515 = vsel %vm1246, %v1500, %v1514
        %v1516 = vsel %vm1248, %v1501, %v1515
        %v1517 = vsel %vm1250, %v1502, %v1516
        %v1518 = vsel %vm1252, %v1503, %v1517
        %v1519 = vsel %vm1254, %v1504, %v1518
        %v1520 = vsel %vm1242, %v1506, %v1505
        %v1521 = vsel %vm1244, %v1507, %v1520
        %v1522 = vsel %vm1246, %v1508, %v1521
        %v1523 = vsel %vm1248, %v1509, %v1522
        %v1524 = vsel %vm1250, %v1510, %v1523
        %v1525 = vsel %vm1252, %v1511, %v1524
        %v1526 = vsel %vm1254, %v1512, %v1525
        %v1527 = vsel %vm1102, %v1100, 0
        %v1529 = vsel %vm1102, %v1519, 0
        %v1531 = vsel %vm1102, %v1526, 0
        %1533 = vmatpush.xpose.msra.mxu0 0.0
        %1534 = vmatpush.xpose.msra.mxu0 0.0
        %1535 = vmatpush.xpose.msra.mxu0 0.0
        %1536 = vmatpush.xpose.msra.mxu0 0.0
        %1537 = vmatpush.xpose.msra.mxu0 0.0
        %1538 = vmatpush.xpose.msra.mxu0 0.0
        %1539 = vmatpush.xpose.msra.mxu0 0.0
        %1540 = vmatpush.xpose.msra.mxu0 0.0
        %1541 = vmatpush.xpose.msra.mxu0 0.0
        %1542 = vmatpush.xpose.msra.mxu0 0.0
        %1543 = vmatpush.xpose.msra.mxu0 0.0
        %1544 = vmatpush.xpose.msra.mxu0 0.0
        %1545 = vmatpush.xpose.msra.mxu0 0.0
        %1546 = vmatpush.xpose.msra.mxu0 0.0
        %1547 = vmatpush.xpose.msra.mxu0 %v1531
        %1548 = vmatpush.xpose.msra.mxu0 %v1529
        %1549 = vmatmul.f32.gmra.mxu0 %v1527
        %v1550 = vpop.f32.mrf.mxu0
        %v1551 = vadd.f32 0.0, %v1550
        %1552 = vdwg.mxu0
        %v1569 = vsub.f32 %v660, %v1451
        %v1570 = vsub.f32 %v673, %v1454
        %v1571 = vsub.f32 %v686, %v1457
        %v1572 = vsub.f32 %v699, %v1460
        %v1573 = vsub.f32 %v712, %v1463
        %v1574 = vsub.f32 %v725, %v1466
        %v1575 = vsub.f32 %v738, %v1469
        %v1576 = vsub.f32 %v751, %v1472
        %v1577 = vsub.f32 %v764, %v1475
        %v1578 = vsub.f32 %v777, %v1478
        %v1579 = vsub.f32 %v790, %v1481
        %v1580 = vsub.f32 %v803, %v1484
        %v1581 = vsub.f32 %v816, %v1487
        %v1582 = vsub.f32 %v829, %v1490
        %v1583 = vsub.f32 %v842, %v1493
        %v1584 = vsub.f32 %v855, %v1496
        %v1585 = vmul.f32 %v1569, 1.442695
        %v1586 = vpow.pop %v1585
        %v1587 = vmul.f32 %v1570, 1.442695
        %v1588 = vpow.pop %v1587
        %v1589 = vmul.f32 %v1571, 1.442695
        %v1590 = vpow.pop %v1589
        %v1591 = vmul.f32 %v1572, 1.442695
        %v1592 = vpow.pop %v1591
        %v1593 = vmul.f32 %v1573, 1.442695
        %v1594 = vpow.pop %v1593
        %v1595 = vmul.f32 %v1574, 1.442695
        %v1596 = vpow.pop %v1595
        %v1597 = vmul.f32 %v1575, 1.442695
        %v1598 = vpow.pop %v1597
        %v1599 = vmul.f32 %v1576, 1.442695
        %v1600 = vpow.pop %v1599
        %v1601 = vmul.f32 %v1577, 1.442695
        %v1602 = vpow.pop %v1601
        %v1603 = vmul.f32 %v1578, 1.442695
        %v1604 = vpow.pop %v1603
        %v1605 = vmul.f32 %v1579, 1.442695
        %v1606 = vpow.pop %v1605
        %v1607 = vmul.f32 %v1580, 1.442695
        %v1608 = vpow.pop %v1607
        %v1609 = vmul.f32 %v1581, 1.442695
        %v1610 = vpow.pop %v1609
        %v1611 = vmul.f32 %v1582, 1.442695
        %v1612 = vpow.pop %v1611
        %v1613 = vmul.f32 %v1583, 1.442695
        %v1614 = vpow.pop %v1613
        %v1615 = vmul.f32 %v1584, 1.442695
        %v1616 = vpow.pop %v1615
        %v1617 = vperm.slane %v1551, 0
        %v1618 = vlaneseq
        %v1619 = vshrl.u32 %v1618, 7
        %1621 = vset.pattern.permute.xlu0 %v1619
        %1622 = vperm.xlu0 %1621, %v1617
        %v1623 = vpop.permute.xlu0 %1622
        %v1624 = vlaneseq
        %v1625 = vshrl.u32 %v1624, 7
        %v1626 = vadd.s32 %v1625, 8
        %1627 = vset.pattern.permute.xlu0 %v1626
        %1628 = vperm.xlu0 %1627, %v1617
        %v1629 = vpop.permute.xlu0 %1628
        %v1630 = vperm.slane %v1551, 1
        %v1631 = vlaneseq
        %v1632 = vshrl.u32 %v1631, 7
        %1634 = vset.pattern.permute.xlu0 %v1632
        %1635 = vperm.xlu0 %1634, %v1630
        %v1636 = vpop.permute.xlu0 %1635
        %v1637 = vlaneseq
        %v1638 = vshrl.u32 %v1637, 7
        %v1639 = vadd.s32 %v1638, 8
        %1640 = vset.pattern.permute.xlu0 %v1639
        %1641 = vperm.xlu0 %1640, %v1630
        %v1642 = vpop.permute.xlu0 %1641
        %v1643 = vperm.slane %v1551, 2
        %v1644 = vlaneseq
        %v1645 = vshrl.u32 %v1644, 7
        %1647 = vset.pattern.permute.xlu0 %v1645
        %1648 = vperm.xlu0 %1647, %v1643
        %v1649 = vpop.permute.xlu0 %1648
        %v1650 = vlaneseq
        %v1651 = vshrl.u32 %v1650, 7
        %v1652 = vadd.s32 %v1651, 8
        %1653 = vset.pattern.permute.xlu0 %v1652
        %1654 = vperm.xlu0 %1653, %v1643
        %v1655 = vpop.permute.xlu0 %1654
        %v1656 = vperm.slane %v1551, 3
        %v1657 = vlaneseq
        %v1658 = vshrl.u32 %v1657, 7
        %1660 = vset.pattern.permute.xlu0 %v1658
        %1661 = vperm.xlu0 %1660, %v1656
        %v1662 = vpop.permute.xlu0 %1661
        %v1663 = vlaneseq
        %v1664 = vshrl.u32 %v1663, 7
        %v1665 = vadd.s32 %v1664, 8
        %1666 = vset.pattern.permute.xlu0 %v1665
        %1667 = vperm.xlu0 %1666, %v1656
        %v1668 = vpop.permute.xlu0 %1667
        %v1669 = vperm.slane %v1551, 4
        %v1670 = vlaneseq
        %v1671 = vshrl.u32 %v1670, 7
        %1673 = vset.pattern.permute.xlu0 %v1671
        %1674 = vperm.xlu0 %1673, %v1669
        %v1675 = vpop.permute.xlu0 %1674
        %v1676 = vlaneseq
        %v1677 = vshrl.u32 %v1676, 7
        %v1678 = vadd.s32 %v1677, 8
        %1679 = vset.pattern.permute.xlu0 %v1678
        %1680 = vperm.xlu0 %1679, %v1669
        %v1681 = vpop.permute.xlu0 %1680
        %v1682 = vperm.slane %v1551, 5
        %v1683 = vlaneseq
        %v1684 = vshrl.u32 %v1683, 7
        %1686 = vset.pattern.permute.xlu0 %v1684
        %1687 = vperm.xlu0 %1686, %v1682
        %v1688 = vpop.permute.xlu0 %1687
        %v1689 = vlaneseq
        %v1690 = vshrl.u32 %v1689, 7
        %v1691 = vadd.s32 %v1690, 8
        %1692 = vset.pattern.permute.xlu0 %v1691
        %1693 = vperm.xlu0 %1692, %v1682
        %v1694 = vpop.permute.xlu0 %1693
        %v1695 = vperm.slane %v1551, 6
        %v1696 = vlaneseq
        %v1697 = vshrl.u32 %v1696, 7
        %1699 = vset.pattern.permute.xlu0 %v1697
        %1700 = vperm.xlu0 %1699, %v1695
        %v1701 = vpop.permute.xlu0 %1700
        %v1702 = vlaneseq
        %v1703 = vshrl.u32 %v1702, 7
        %v1704 = vadd.s32 %v1703, 8
        %1705 = vset.pattern.permute.xlu0 %v1704
        %1706 = vperm.xlu0 %1705, %v1695
        %v1707 = vpop.permute.xlu0 %1706
        %v1708 = vperm.slane %v1551, 7
        %v1709 = vlaneseq
        %v1710 = vshrl.u32 %v1709, 7
        %1712 = vset.pattern.permute.xlu0 %v1710
        %1713 = vperm.xlu0 %1712, %v1708
        %v1714 = vpop.permute.xlu0 %1713
        %v1715 = vlaneseq
        %v1716 = vshrl.u32 %v1715, 7
        %v1717 = vadd.s32 %v1716, 8
        %1718 = vset.pattern.permute.xlu0 %v1717
        %1719 = vperm.xlu0 %1718, %v1708
        %v1720 = vpop.permute.xlu0 %1719
        %v1721 = vsub.f32 %v1080, %v1623
        %v1722 = vsub.f32 %v1081, %v1629
        %v1723 = vsub.f32 %v1082, %v1636
        %v1724 = vsub.f32 %v1083, %v1642
        %v1725 = vsub.f32 %v1084, %v1649
        %v1726 = vsub.f32 %v1085, %v1655
        %v1727 = vsub.f32 %v1086, %v1662
        %v1728 = vsub.f32 %v1087, %v1668
        %v1729 = vsub.f32 %v1088, %v1675
        %v1730 = vsub.f32 %v1089, %v1681
        %v1731 = vsub.f32 %v1090, %v1688
        %v1732 = vsub.f32 %v1091, %v1694
        %v1733 = vsub.f32 %v1092, %v1701
        %v1734 = vsub.f32 %v1093, %v1707
        %v1735 = vsub.f32 %v1094, %v1714
        %v1736 = vsub.f32 %v1095, %v1720
        %v1737 = vmul.f32 %v1721, 1.442695
        %v1738 = vpow.pop %v1737
        %v1739 = vmul.f32 %v1722, 1.442695
        %v1740 = vpow.pop %v1739
        %v1741 = vmul.f32 %v1723, 1.442695
        %v1742 = vpow.pop %v1741
        %v1743 = vmul.f32 %v1724, 1.442695
        %v1744 = vpow.pop %v1743
        %v1745 = vmul.f32 %v1725, 1.442695
        %v1746 = vpow.pop %v1745
        %v1747 = vmul.f32 %v1726, 1.442695
        %v1748 = vpow.pop %v1747
        %v1749 = vmul.f32 %v1727, 1.442695
        %v1750 = vpow.pop %v1749
        %v1751 = vmul.f32 %v1728, 1.442695
        %v1752 = vpow.pop %v1751
        %v1753 = vmul.f32 %v1729, 1.442695
        %v1754 = vpow.pop %v1753
        %v1755 = vmul.f32 %v1730, 1.442695
        %v1756 = vpow.pop %v1755
        %v1757 = vmul.f32 %v1731, 1.442695
        %v1758 = vpow.pop %v1757
        %v1759 = vmul.f32 %v1732, 1.442695
        %v1760 = vpow.pop %v1759
        %v1761 = vmul.f32 %v1733, 1.442695
        %v1762 = vpow.pop %v1761
        %v1763 = vmul.f32 %v1734, 1.442695
        %v1764 = vpow.pop %v1763
        %v1765 = vmul.f32 %v1735, 1.442695
        %v1766 = vpow.pop %v1765
        %v1767 = vmul.f32 %v1736, 1.442695
        %v1768 = vpow.pop %v1767
        %v1769 = vsel %vm1102, %v1586, 0.0
        %1770 = vadd.xlane.f32.xlu0 %v1769
        %v1771 = vpop.xlane.xlu0 %1770
        %v1772 = vsel %vm1102, %v1588, 0.0
        %1773 = vadd.xlane.f32.xlu0 %v1772
        %v1774 = vpop.xlane.xlu0 %1773
        %v1775 = vsel %vm1102, %v1590, 0.0
        %1776 = vadd.xlane.f32.xlu0 %v1775
        %v1777 = vpop.xlane.xlu0 %1776
        %v1778 = vsel %vm1102, %v1592, 0.0
        %1779 = vadd.xlane.f32.xlu0 %v1778
        %v1780 = vpop.xlane.xlu0 %1779
        %v1781 = vsel %vm1102, %v1594, 0.0
        %1782 = vadd.xlane.f32.xlu0 %v1781
        %v1783 = vpop.xlane.xlu0 %1782
        %v1784 = vsel %vm1102, %v1596, 0.0
        %1785 = vadd.xlane.f32.xlu0 %v1784
        %v1786 = vpop.xlane.xlu0 %1785
        %v1787 = vsel %vm1102, %v1598, 0.0
        %1788 = vadd.xlane.f32.xlu0 %v1787
        %v1789 = vpop.xlane.xlu0 %1788
        %v1790 = vsel %vm1102, %v1600, 0.0
        %1791 = vadd.xlane.f32.xlu0 %v1790
        %v1792 = vpop.xlane.xlu0 %1791
        %v1793 = vsel %vm1102, %v1602, 0.0
        %1794 = vadd.xlane.f32.xlu0 %v1793
        %v1795 = vpop.xlane.xlu0 %1794
        %v1796 = vsel %vm1102, %v1604, 0.0
        %1797 = vadd.xlane.f32.xlu0 %v1796
        %v1798 = vpop.xlane.xlu0 %1797
        %v1799 = vsel %vm1102, %v1606, 0.0
        %1800 = vadd.xlane.f32.xlu0 %v1799
        %v1801 = vpop.xlane.xlu0 %1800
        %v1802 = vsel %vm1102, %v1608, 0.0
        %1803 = vadd.xlane.f32.xlu0 %v1802
        %v1804 = vpop.xlane.xlu0 %1803
        %v1805 = vsel %vm1102, %v1610, 0.0
        %1806 = vadd.xlane.f32.xlu0 %v1805
        %v1807 = vpop.xlane.xlu0 %1806
        %v1808 = vsel %vm1102, %v1612, 0.0
        %1809 = vadd.xlane.f32.xlu0 %v1808
        %v1810 = vpop.xlane.xlu0 %1809
        %v1811 = vsel %vm1102, %v1614, 0.0
        %1812 = vadd.xlane.f32.xlu0 %v1811
        %v1813 = vpop.xlane.xlu0 %1812
        %v1814 = vsel %vm1102, %v1616, 0.0
        %1815 = vadd.xlane.f32.xlu0 %v1814
        %v1816 = vpop.xlane.xlu0 %1815
        %v1817 = vsel %vm1151, %v1738, 0.0
        %1818 = vadd.xlane.f32.xlu0 %v1817
        %v1819 = vpop.xlane.xlu0 %1818
        %v1820 = vsel %vm1151, %v1740, 0.0
        %1821 = vadd.xlane.f32.xlu0 %v1820
        %v1822 = vpop.xlane.xlu0 %1821
        %v1823 = vsel %vm1151, %v1742, 0.0
        %1824 = vadd.xlane.f32.xlu0 %v1823
        %v1825 = vpop.xlane.xlu0 %1824
        %v1826 = vsel %vm1151, %v1744, 0.0
        %1827 = vadd.xlane.f32.xlu0 %v1826
        %v1828 = vpop.xlane.xlu0 %1827
        %v1829 = vsel %vm1151, %v1746, 0.0
        %1830 = vadd.xlane.f32.xlu0 %v1829
        %v1831 = vpop.xlane.xlu0 %1830
        %v1832 = vsel %vm1151, %v1748, 0.0
        %1833 = vadd.xlane.f32.xlu0 %v1832
        %v1834 = vpop.xlane.xlu0 %1833
        %v1835 = vsel %vm1151, %v1750, 0.0
        %1836 = vadd.xlane.f32.xlu0 %v1835
        %v1837 = vpop.xlane.xlu0 %1836
        %v1838 = vsel %vm1151, %v1752, 0.0
        %1839 = vadd.xlane.f32.xlu0 %v1838
        %v1840 = vpop.xlane.xlu0 %1839
        %v1841 = vsel %vm1151, %v1754, 0.0
        %1842 = vadd.xlane.f32.xlu0 %v1841
        %v1843 = vpop.xlane.xlu0 %1842
        %v1844 = vsel %vm1151, %v1756, 0.0
        %1845 = vadd.xlane.f32.xlu0 %v1844
        %v1846 = vpop.xlane.xlu0 %1845
        %v1847 = vsel %vm1151, %v1758, 0.0
        %1848 = vadd.xlane.f32.xlu0 %v1847
        %v1849 = vpop.xlane.xlu0 %1848
        %v1850 = vsel %vm1151, %v1760, 0.0
        %1851 = vadd.xlane.f32.xlu0 %v1850
        %v1852 = vpop.xlane.xlu0 %1851
        %v1853 = vsel %vm1151, %v1762, 0.0
        %1854 = vadd.xlane.f32.xlu0 %v1853
        %v1855 = vpop.xlane.xlu0 %1854
        %v1856 = vsel %vm1151, %v1764, 0.0
        %1857 = vadd.xlane.f32.xlu0 %v1856
        %v1858 = vpop.xlane.xlu0 %1857
        %v1859 = vsel %vm1151, %v1766, 0.0
        %1860 = vadd.xlane.f32.xlu0 %v1859
        %v1861 = vpop.xlane.xlu0 %1860
        %v1862 = vsel %vm1151, %v1768, 0.0
        %1863 = vadd.xlane.f32.xlu0 %v1862
        %v1864 = vpop.xlane.xlu0 %1863
        %v1881 = vperm.slane %v1819, %v1067
        %v1882 = vperm.slane %v1822, %v1217
        %v1883 = vsel %vm1219, %v1882, %v1881
        %v1884 = vperm.slane %v1825, %v1067
        %v1885 = vperm.slane %v1828, %v1217
        %v1886 = vsel %vm1219, %v1885, %v1884
        %v1887 = vperm.slane %v1831, %v1067
        %v1888 = vperm.slane %v1834, %v1217
        %v1889 = vsel %vm1219, %v1888, %v1887
        %v1890 = vperm.slane %v1837, %v1067
        %v1891 = vperm.slane %v1840, %v1217
        %v1892 = vsel %vm1219, %v1891, %v1890
        %v1893 = vperm.slane %v1843, %v1067
        %v1894 = vperm.slane %v1846, %v1217
        %v1895 = vsel %vm1219, %v1894, %v1893
        %v1896 = vperm.slane %v1849, %v1067
        %v1897 = vperm.slane %v1852, %v1217
        %v1898 = vsel %vm1219, %v1897, %v1896
        %v1899 = vperm.slane %v1855, %v1067
        %v1900 = vperm.slane %v1858, %v1217
        %v1901 = vsel %vm1219, %v1900, %v1899
        %v1902 = vperm.slane %v1861, %v1067
        %v1903 = vperm.slane %v1864, %v1217
        %v1904 = vsel %vm1219, %v1903, %v1902
        %v1905 = vsel %vm1242, %v1886, %v1883
        %v1906 = vsel %vm1244, %v1889, %v1905
        %v1907 = vsel %vm1246, %v1892, %v1906
        %v1908 = vsel %vm1248, %v1895, %v1907
        %v1909 = vsel %vm1250, %v1898, %v1908
        %v1910 = vsel %vm1252, %v1901, %v1909
        %v1911 = vsel %vm1254, %v1904, %v1910
        %v1912 = vsel %vm1151, %v1911, 0
        %1914 = vmatpush.xpose.msra.mxu0 0.0
        %1915 = vmatpush.xpose.msra.mxu0 0.0
        %1916 = vmatpush.xpose.msra.mxu0 0.0
        %1917 = vmatpush.xpose.msra.mxu0 0.0
        %1918 = vmatpush.xpose.msra.mxu0 0.0
        %1919 = vmatpush.xpose.msra.mxu0 0.0
        %1920 = vmatpush.xpose.msra.mxu0 0.0
        %1921 = vmatpush.xpose.msra.mxu0 0.0
        %1922 = vmatpush.xpose.msra.mxu0 0.0
        %1923 = vmatpush.xpose.msra.mxu0 0.0
        %1924 = vmatpush.xpose.msra.mxu0 0.0
        %1925 = vmatpush.xpose.msra.mxu0 0.0
        %1926 = vmatpush.xpose.msra.mxu0 0.0
        %1927 = vmatpush.xpose.msra.mxu0 0.0
        %1928 = vmatpush.xpose.msra.mxu0 0.0
        %1929 = vmatpush.xpose.msra.mxu0 %v1912
        %1930 = vmatmul.f32.gmra.mxu0 %v1257
        %v1931 = vpop.f32.mrf.mxu0
        %v1932 = vadd.f32 0.0, %v1931
        %1933 = vmatmul.f32.gmra.mxu0 %v1260
        %v1934 = vpop.f32.mrf.mxu0
        %v1935 = vadd.f32 0.0, %v1934
        %1936 = vdwg.mxu0
        %v1939 = vperm.slane %v1932, 0
        %v1940 = vlaneseq
        %v1941 = vshrl.u32 %v1940, 7
        %1943 = vset.pattern.permute.xlu0 %v1941
        %1944 = vperm.xlu0 %1943, %v1939
        %v1945 = vpop.permute.xlu0 %1944
        %v1946 = vperm.slane %v1932, 1
        %v1947 = vlaneseq
        %v1948 = vshrl.u32 %v1947, 7
        %1950 = vset.pattern.permute.xlu0 %v1948
        %1951 = vperm.xlu0 %1950, %v1946
        %v1952 = vpop.permute.xlu0 %1951
        %v1953 = vperm.slane %v1932, 2
        %v1954 = vlaneseq
        %v1955 = vshrl.u32 %v1954, 7
        %1957 = vset.pattern.permute.xlu0 %v1955
        %1958 = vperm.xlu0 %1957, %v1953
        %v1959 = vpop.permute.xlu0 %1958
        %v1960 = vperm.slane %v1932, 3
        %v1961 = vlaneseq
        %v1962 = vshrl.u32 %v1961, 7
        %1964 = vset.pattern.permute.xlu0 %v1962
        %1965 = vperm.xlu0 %1964, %v1960
        %v1966 = vpop.permute.xlu0 %1965
        %v1967 = vperm.slane %v1932, 4
        %v1968 = vlaneseq
        %v1969 = vshrl.u32 %v1968, 7
        %1971 = vset.pattern.permute.xlu0 %v1969
        %1972 = vperm.xlu0 %1971, %v1967
        %v1973 = vpop.permute.xlu0 %1972
        %v1974 = vperm.slane %v1932, 5
        %v1975 = vlaneseq
        %v1976 = vshrl.u32 %v1975, 7
        %1978 = vset.pattern.permute.xlu0 %v1976
        %1979 = vperm.xlu0 %1978, %v1974
        %v1980 = vpop.permute.xlu0 %1979
        %v1981 = vperm.slane %v1932, 6
        %v1982 = vlaneseq
        %v1983 = vshrl.u32 %v1982, 7
        %1985 = vset.pattern.permute.xlu0 %v1983
        %1986 = vperm.xlu0 %1985, %v1981
        %v1987 = vpop.permute.xlu0 %1986
        %v1988 = vperm.slane %v1932, 7
        %v1989 = vlaneseq
        %v1990 = vshrl.u32 %v1989, 7
        %1992 = vset.pattern.permute.xlu0 %v1990
        %1993 = vperm.xlu0 %1992, %v1988
        %v1994 = vpop.permute.xlu0 %1993
        %v1995 = vperm.slane %v1935, 0
        %v1996 = vlaneseq
        %v1997 = vshrl.u32 %v1996, 7
        %1999 = vset.pattern.permute.xlu0 %v1997
        %2000 = vperm.xlu0 %1999, %v1995
        %v2001 = vpop.permute.xlu0 %2000
        %v2002 = vperm.slane %v1935, 1
        %v2003 = vlaneseq
        %v2004 = vshrl.u32 %v2003, 7
        %2006 = vset.pattern.permute.xlu0 %v2004
        %2007 = vperm.xlu0 %2006, %v2002
        %v2008 = vpop.permute.xlu0 %2007
        %v2009 = vperm.slane %v1935, 2
        %v2010 = vlaneseq
        %v2011 = vshrl.u32 %v2010, 7
        %2013 = vset.pattern.permute.xlu0 %v2011
        %2014 = vperm.xlu0 %2013, %v2009
        %v2015 = vpop.permute.xlu0 %2014
        %v2016 = vperm.slane %v1935, 3
        %v2017 = vlaneseq
        %v2018 = vshrl.u32 %v2017, 7
        %2020 = vset.pattern.permute.xlu0 %v2018
        %2021 = vperm.xlu0 %2020, %v2016
        %v2022 = vpop.permute.xlu0 %2021
        %v2023 = vperm.slane %v1935, 4
        %v2024 = vlaneseq
        %v2025 = vshrl.u32 %v2024, 7
        %2027 = vset.pattern.permute.xlu0 %v2025
        %2028 = vperm.xlu0 %2027, %v2023
        %v2029 = vpop.permute.xlu0 %2028
        %v2030 = vperm.slane %v1935, 5
        %v2031 = vlaneseq
        %v2032 = vshrl.u32 %v2031, 7
        %2034 = vset.pattern.permute.xlu0 %v2032
        %2035 = vperm.xlu0 %2034, %v2030
        %v2036 = vpop.permute.xlu0 %2035
        %v2037 = vperm.slane %v1935, 6
        %v2038 = vlaneseq
        %v2039 = vshrl.u32 %v2038, 7
        %2041 = vset.pattern.permute.xlu0 %v2039
        %2042 = vperm.xlu0 %2041, %v2037
        %v2043 = vpop.permute.xlu0 %2042
        %v2044 = vperm.slane %v1935, 7
        %v2045 = vlaneseq
        %v2046 = vshrl.u32 %v2045, 7
        %2048 = vset.pattern.permute.xlu0 %v2046
        %2049 = vperm.xlu0 %2048, %v2044
        %v2050 = vpop.permute.xlu0 %2049
        %v2067 = vadd.f32 %v1771, %v1945
        %v2068 = vadd.f32 %v1774, %v1952
        %v2069 = vadd.f32 %v1777, %v1959
        %v2070 = vadd.f32 %v1780, %v1966
        %v2071 = vadd.f32 %v1783, %v1973
        %v2072 = vadd.f32 %v1786, %v1980
        %v2073 = vadd.f32 %v1789, %v1987
        %v2074 = vadd.f32 %v1792, %v1994
        %v2075 = vadd.f32 %v1795, %v2001
        %v2076 = vadd.f32 %v1798, %v2008
        %v2077 = vadd.f32 %v1801, %v2015
        %v2078 = vadd.f32 %v1804, %v2022
        %v2079 = vadd.f32 %v1807, %v2029
        %v2080 = vadd.f32 %v1810, %v2036
        %v2081 = vadd.f32 %v1813, %v2043
        %v2082 = vadd.f32 %v1816, %v2050
        %v2083 = vrcp.pop %v2067
        %v2084 = vrcp.pop %v2068
        %v2085 = vrcp.pop %v2069
        %v2086 = vrcp.pop %v2070
        %v2087 = vrcp.pop %v2071
        %v2088 = vrcp.pop %v2072
        %v2089 = vrcp.pop %v2073
        %v2090 = vrcp.pop %v2074
        %v2091 = vrcp.pop %v2075
        %v2092 = vrcp.pop %v2076
        %v2093 = vrcp.pop %v2077
        %v2094 = vrcp.pop %v2078
        %v2095 = vrcp.pop %v2079
        %v2096 = vrcp.pop %v2080
        %v2097 = vrcp.pop %v2081
        %v2098 = vrcp.pop %v2082
        %2115 = vset.pattern.permute.xlu0 0
        %2116 = vperm.xlu0 %2115, %v2083
        %v2117 = vpop.permute.xlu0 %2116
        %2118 = vset.pattern.permute.xlu0 0
        %2119 = vperm.xlu0 %2118, %v2084
        %v2120 = vpop.permute.xlu0 %2119
        %2121 = vset.pattern.permute.xlu0 0
        %2122 = vperm.xlu0 %2121, %v2085
        %v2123 = vpop.permute.xlu0 %2122
        %2124 = vset.pattern.permute.xlu0 0
        %2125 = vperm.xlu0 %2124, %v2086
        %v2126 = vpop.permute.xlu0 %2125
        %2127 = vset.pattern.permute.xlu0 0
        %2128 = vperm.xlu0 %2127, %v2087
        %v2129 = vpop.permute.xlu0 %2128
        %2130 = vset.pattern.permute.xlu0 0
        %2131 = vperm.xlu0 %2130, %v2088
        %v2132 = vpop.permute.xlu0 %2131
        %2133 = vset.pattern.permute.xlu0 0
        %2134 = vperm.xlu0 %2133, %v2089
        %v2135 = vpop.permute.xlu0 %2134
        %2136 = vset.pattern.permute.xlu0 0
        %2137 = vperm.xlu0 %2136, %v2090
        %v2138 = vpop.permute.xlu0 %2137
        %2139 = vset.pattern.permute.xlu0 0
        %2140 = vperm.xlu0 %2139, %v2091
        %v2141 = vpop.permute.xlu0 %2140
        %2142 = vset.pattern.permute.xlu0 0
        %2143 = vperm.xlu0 %2142, %v2092
        %v2144 = vpop.permute.xlu0 %2143
        %2145 = vset.pattern.permute.xlu0 0
        %2146 = vperm.xlu0 %2145, %v2093
        %v2147 = vpop.permute.xlu0 %2146
        %2148 = vset.pattern.permute.xlu0 0
        %2149 = vperm.xlu0 %2148, %v2094
        %v2150 = vpop.permute.xlu0 %2149
        %2151 = vset.pattern.permute.xlu0 0
        %2152 = vperm.xlu0 %2151, %v2095
        %v2153 = vpop.permute.xlu0 %2152
        %2154 = vset.pattern.permute.xlu0 0
        %2155 = vperm.xlu0 %2154, %v2096
        %v2156 = vpop.permute.xlu0 %2155
        %2157 = vset.pattern.permute.xlu0 0
        %2158 = vperm.xlu0 %2157, %v2097
        %v2159 = vpop.permute.xlu0 %2158
        %2160 = vset.pattern.permute.xlu0 0
        %2161 = vperm.xlu0 %2160, %v2098
        %v2162 = vpop.permute.xlu0 %2161
        %v2163 = vperm.slane %v2117, %v1067
        %v2164 = vperm.slane %v2120, %v1067
        %v2165 = vperm.slane %v2123, %v1067
        %v2166 = vperm.slane %v2126, %v1067
        %v2167 = vperm.slane %v2129, %v1067
        %v2168 = vperm.slane %v2132, %v1067
        %v2169 = vperm.slane %v2135, %v1067
        %v2170 = vperm.slane %v2138, %v1067
        %v2171 = vperm.slane %v2141, %v1067
        %v2172 = vperm.slane %v2144, %v1067
        %v2173 = vperm.slane %v2147, %v1067
        %v2174 = vperm.slane %v2150, %v1067
        %v2175 = vperm.slane %v2153, %v1067
        %v2176 = vperm.slane %v2156, %v1067
        %v2177 = vperm.slane %v2159, %v1067
        %v2178 = vperm.slane %v2162, %v1067
        %v2179 = vsel %vm1242, %v2164, %v2163
        %v2180 = vsel %vm1244, %v2165, %v2179
        %v2181 = vsel %vm1246, %v2166, %v2180
        %v2182 = vsel %vm1248, %v2167, %v2181
        %v2183 = vsel %vm1250, %v2168, %v2182
        %v2184 = vsel %vm1252, %v2169, %v2183
        %v2185 = vsel %vm1254, %v2170, %v2184
        %v2186 = vsel %vm1242, %v2172, %v2171
        %v2187 = vsel %vm1244, %v2173, %v2186
        %v2188 = vsel %vm1246, %v2174, %v2187
        %v2189 = vsel %vm1248, %v2175, %v2188
        %v2190 = vsel %vm1250, %v2176, %v2189
        %v2191 = vsel %vm1252, %v2177, %v2190
        %v2192 = vsel %vm1254, %v2178, %v2191
        %v2193 = vsel %vm1102, %v2185, 0
        %v2195 = vsel %vm1102, %v2192, 0
        %2197 = vmatpush.xpose.msra.mxu0 0.0
        %2198 = vmatpush.xpose.msra.mxu0 0.0
        %2199 = vmatpush.xpose.msra.mxu0 0.0
        %2200 = vmatpush.xpose.msra.mxu0 0.0
        %2201 = vmatpush.xpose.msra.mxu0 0.0
        %2202 = vmatpush.xpose.msra.mxu0 0.0
        %2203 = vmatpush.xpose.msra.mxu0 0.0
        %2204 = vmatpush.xpose.msra.mxu0 0.0
        %2205 = vmatpush.xpose.msra.mxu0 0.0
        %2206 = vmatpush.xpose.msra.mxu0 0.0
        %2207 = vmatpush.xpose.msra.mxu0 0.0
        %2208 = vmatpush.xpose.msra.mxu0 0.0
        %2209 = vmatpush.xpose.msra.mxu0 0.0
        %2210 = vmatpush.xpose.msra.mxu0 0.0
        %2211 = vmatpush.xpose.msra.mxu0 %v2195
        %2212 = vmatpush.xpose.msra.mxu0 %v2193
        %2213 = vmatmul.f32.gmra.mxu0 %v1527
        %v2214 = vpop.f32.mrf.mxu0
        %v2215 = vadd.f32 0.0, %v2214
        %2216 = vdwg.mxu0
        %v2217 = vpack.c.bf16 %v1586, %v1586
        %v2218 = vpack.c.bf16 %v1588, %v1588
        %v2219 = vpack.c.bf16 %v1590, %v1590
        %v2220 = vpack.c.bf16 %v1592, %v1592
        %v2221 = vpack.c.bf16 %v1594, %v1594
        %v2222 = vpack.c.bf16 %v1596, %v1596
        %v2223 = vpack.c.bf16 %v1598, %v1598
        %v2224 = vpack.c.bf16 %v1600, %v1600
        %v2225 = vpack.c.bf16 %v1602, %v1602
        %v2226 = vpack.c.bf16 %v1604, %v1604
        %v2227 = vpack.c.bf16 %v1606, %v1606
        %v2228 = vpack.c.bf16 %v1608, %v1608
        %v2229 = vpack.c.bf16 %v1610, %v1610
        %v2230 = vpack.c.bf16 %v1612, %v1612
        %v2231 = vpack.c.bf16 %v1614, %v1614
        %v2232 = vpack.c.bf16 %v1616, %v1616
        %v2234 = vsel %vm1102, %v2217, 0
        %vm2236 = vcmask 1043456
        %v2238 = vsel %vm2236, %v585, 0
        %2240 = vmatpush.bf16.msra.mxu0 0
        %2241 = vmatpush.bf16.msra.mxu0 0
        %2242 = vmatpush.bf16.msra.mxu0 0
        %2243 = vmatpush.bf16.msra.mxu0 0
        %2244 = vmatpush.bf16.msra.mxu0 0
        %2245 = vmatpush.bf16.msra.mxu0 0
        %2246 = vmatpush.bf16.msra.mxu0 0
        %2247 = vmatpush.bf16.msra.mxu0 %v2238
        %2248 = vmatmul.bf16.gmra.mxu0 %v2234
        %v2249 = vpop.f32.mrf.mxu0
        %v2250 = vadd.f32 0.0, %v2249
        %v2251 = vpop.f32.mrf.mxu0
        %2252 = vdwg.mxu0
        %v2254 = vsel %vm1102, %v2218, 0
        %v2257 = vsel %vm2236, %v586, 0
        %2259 = vmatpush.bf16.msra.mxu0 0
        %2260 = vmatpush.bf16.msra.mxu0 0
        %2261 = vmatpush.bf16.msra.mxu0 0
        %2262 = vmatpush.bf16.msra.mxu0 0
        %2263 = vmatpush.bf16.msra.mxu0 0
        %2264 = vmatpush.bf16.msra.mxu0 0
        %2265 = vmatpush.bf16.msra.mxu0 0
        %2266 = vmatpush.bf16.msra.mxu0 %v2257
        %2267 = vmatmul.bf16.gmra.mxu0 %v2254
        %v2268 = vpop.f32.mrf.mxu0
        %v2269 = vadd.f32 0.0, %v2268
        %v2270 = vpop.f32.mrf.mxu0
        %2271 = vdwg.mxu0
        %v2273 = vsel %vm1102, %v2219, 0
        %v2276 = vsel %vm2236, %v587, 0
        %2278 = vmatpush.bf16.msra.mxu0 0
        %2279 = vmatpush.bf16.msra.mxu0 0
        %2280 = vmatpush.bf16.msra.mxu0 0
        %2281 = vmatpush.bf16.msra.mxu0 0
        %2282 = vmatpush.bf16.msra.mxu0 0
        %2283 = vmatpush.bf16.msra.mxu0 0
        %2284 = vmatpush.bf16.msra.mxu0 0
        %2285 = vmatpush.bf16.msra.mxu0 %v2276
        %2286 = vmatmul.bf16.gmra.mxu0 %v2273
        %v2287 = vpop.f32.mrf.mxu0
        %v2288 = vadd.f32 0.0, %v2287
        %v2289 = vpop.f32.mrf.mxu0
        %2290 = vdwg.mxu0
        %v2292 = vsel %vm1102, %v2220, 0
        %v2295 = vsel %vm2236, %v588, 0
        %2297 = vmatpush.bf16.msra.mxu0 0
        %2298 = vmatpush.bf16.msra.mxu0 0
        %2299 = vmatpush.bf16.msra.mxu0 0
        %2300 = vmatpush.bf16.msra.mxu0 0
        %2301 = vmatpush.bf16.msra.mxu0 0
        %2302 = vmatpush.bf16.msra.mxu0 0
        %2303 = vmatpush.bf16.msra.mxu0 0
        %2304 = vmatpush.bf16.msra.mxu0 %v2295
        %2305 = vmatmul.bf16.gmra.mxu0 %v2292
        %v2306 = vpop.f32.mrf.mxu0
        %v2307 = vadd.f32 0.0, %v2306
        %v2308 = vpop.f32.mrf.mxu0
        %2309 = vdwg.mxu0
        %v2311 = vsel %vm1102, %v2221, 0
        %v2314 = vsel %vm2236, %v589, 0
        %2316 = vmatpush.bf16.msra.mxu0 0
        %2317 = vmatpush.bf16.msra.mxu0 0
        %2318 = vmatpush.bf16.msra.mxu0 0
        %2319 = vmatpush.bf16.msra.mxu0 0
        %2320 = vmatpush.bf16.msra.mxu0 0
        %2321 = vmatpush.bf16.msra.mxu0 0
        %2322 = vmatpush.bf16.msra.mxu0 0
        %2323 = vmatpush.bf16.msra.mxu0 %v2314
        %2324 = vmatmul.bf16.gmra.mxu0 %v2311
        %v2325 = vpop.f32.mrf.mxu0
        %v2326 = vadd.f32 0.0, %v2325
        %v2327 = vpop.f32.mrf.mxu0
        %2328 = vdwg.mxu0
        %v2330 = vsel %vm1102, %v2222, 0
        %v2333 = vsel %vm2236, %v590, 0
        %2335 = vmatpush.bf16.msra.mxu0 0
        %2336 = vmatpush.bf16.msra.mxu0 0
        %2337 = vmatpush.bf16.msra.mxu0 0
        %2338 = vmatpush.bf16.msra.mxu0 0
        %2339 = vmatpush.bf16.msra.mxu0 0
        %2340 = vmatpush.bf16.msra.mxu0 0
        %2341 = vmatpush.bf16.msra.mxu0 0
        %2342 = vmatpush.bf16.msra.mxu0 %v2333
        %2343 = vmatmul.bf16.gmra.mxu0 %v2330
        %v2344 = vpop.f32.mrf.mxu0
        %v2345 = vadd.f32 0.0, %v2344
        %v2346 = vpop.f32.mrf.mxu0
        %2347 = vdwg.mxu0
        %v2349 = vsel %vm1102, %v2223, 0
        %v2352 = vsel %vm2236, %v591, 0
        %2354 = vmatpush.bf16.msra.mxu0 0
        %2355 = vmatpush.bf16.msra.mxu0 0
        %2356 = vmatpush.bf16.msra.mxu0 0
        %2357 = vmatpush.bf16.msra.mxu0 0
        %2358 = vmatpush.bf16.msra.mxu0 0
        %2359 = vmatpush.bf16.msra.mxu0 0
        %2360 = vmatpush.bf16.msra.mxu0 0
        %2361 = vmatpush.bf16.msra.mxu0 %v2352
        %2362 = vmatmul.bf16.gmra.mxu0 %v2349
        %v2363 = vpop.f32.mrf.mxu0
        %v2364 = vadd.f32 0.0, %v2363
        %v2365 = vpop.f32.mrf.mxu0
        %2366 = vdwg.mxu0
        %v2368 = vsel %vm1102, %v2224, 0
        %v2371 = vsel %vm2236, %v592, 0
        %2373 = vmatpush.bf16.msra.mxu0 0
        %2374 = vmatpush.bf16.msra.mxu0 0
        %2375 = vmatpush.bf16.msra.mxu0 0
        %2376 = vmatpush.bf16.msra.mxu0 0
        %2377 = vmatpush.bf16.msra.mxu0 0
        %2378 = vmatpush.bf16.msra.mxu0 0
        %2379 = vmatpush.bf16.msra.mxu0 0
        %2380 = vmatpush.bf16.msra.mxu0 %v2371
        %2381 = vmatmul.bf16.gmra.mxu0 %v2368
        %v2382 = vpop.f32.mrf.mxu0
        %v2383 = vadd.f32 0.0, %v2382
        %v2384 = vpop.f32.mrf.mxu0
        %2385 = vdwg.mxu0
        %v2387 = vsel %vm1102, %v2225, 0
        %v2390 = vsel %vm2236, %v593, 0
        %2392 = vmatpush.bf16.msra.mxu0 0
        %2393 = vmatpush.bf16.msra.mxu0 0
        %2394 = vmatpush.bf16.msra.mxu0 0
        %2395 = vmatpush.bf16.msra.mxu0 0
        %2396 = vmatpush.bf16.msra.mxu0 0
        %2397 = vmatpush.bf16.msra.mxu0 0
        %2398 = vmatpush.bf16.msra.mxu0 0
        %2399 = vmatpush.bf16.msra.mxu0 %v2390
        %2400 = vmatmul.bf16.gmra.mxu0 %v2387
        %v2401 = vpop.f32.mrf.mxu0
        %v2402 = vadd.f32 0.0, %v2401
        %v2403 = vpop.f32.mrf.mxu0
        %2404 = vdwg.mxu0
        %v2406 = vsel %vm1102, %v2226, 0
        %v2409 = vsel %vm2236, %v594, 0
        %2411 = vmatpush.bf16.msra.mxu0 0
        %2412 = vmatpush.bf16.msra.mxu0 0
        %2413 = vmatpush.bf16.msra.mxu0 0
        %2414 = vmatpush.bf16.msra.mxu0 0
        %2415 = vmatpush.bf16.msra.mxu0 0
        %2416 = vmatpush.bf16.msra.mxu0 0
        %2417 = vmatpush.bf16.msra.mxu0 0
        %2418 = vmatpush.bf16.msra.mxu0 %v2409
        %2419 = vmatmul.bf16.gmra.mxu0 %v2406
        %v2420 = vpop.f32.mrf.mxu0
        %v2421 = vadd.f32 0.0, %v2420
        %v2422 = vpop.f32.mrf.mxu0
        %2423 = vdwg.mxu0
        %v2425 = vsel %vm1102, %v2227, 0
        %v2428 = vsel %vm2236, %v595, 0
        %2430 = vmatpush.bf16.msra.mxu0 0
        %2431 = vmatpush.bf16.msra.mxu0 0
        %2432 = vmatpush.bf16.msra.mxu0 0
        %2433 = vmatpush.bf16.msra.mxu0 0
        %2434 = vmatpush.bf16.msra.mxu0 0
        %2435 = vmatpush.bf16.msra.mxu0 0
        %2436 = vmatpush.bf16.msra.mxu0 0
        %2437 = vmatpush.bf16.msra.mxu0 %v2428
        %2438 = vmatmul.bf16.gmra.mxu0 %v2425
        %v2439 = vpop.f32.mrf.mxu0
        %v2440 = vadd.f32 0.0, %v2439
        %v2441 = vpop.f32.mrf.mxu0
        %2442 = vdwg.mxu0
        %v2444 = vsel %vm1102, %v2228, 0
        %v2447 = vsel %vm2236, %v596, 0
        %2449 = vmatpush.bf16.msra.mxu0 0
        %2450 = vmatpush.bf16.msra.mxu0 0
        %2451 = vmatpush.bf16.msra.mxu0 0
        %2452 = vmatpush.bf16.msra.mxu0 0
        %2453 = vmatpush.bf16.msra.mxu0 0
        %2454 = vmatpush.bf16.msra.mxu0 0
        %2455 = vmatpush.bf16.msra.mxu0 0
        %2456 = vmatpush.bf16.msra.mxu0 %v2447
        %2457 = vmatmul.bf16.gmra.mxu0 %v2444
        %v2458 = vpop.f32.mrf.mxu0
        %v2459 = vadd.f32 0.0, %v2458
        %v2460 = vpop.f32.mrf.mxu0
        %2461 = vdwg.mxu0
        %v2463 = vsel %vm1102, %v2229, 0
        %v2466 = vsel %vm2236, %v597, 0
        %2468 = vmatpush.bf16.msra.mxu0 0
        %2469 = vmatpush.bf16.msra.mxu0 0
        %2470 = vmatpush.bf16.msra.mxu0 0
        %2471 = vmatpush.bf16.msra.mxu0 0
        %2472 = vmatpush.bf16.msra.mxu0 0
        %2473 = vmatpush.bf16.msra.mxu0 0
        %2474 = vmatpush.bf16.msra.mxu0 0
        %2475 = vmatpush.bf16.msra.mxu0 %v2466
        %2476 = vmatmul.bf16.gmra.mxu0 %v2463
        %v2477 = vpop.f32.mrf.mxu0
        %v2478 = vadd.f32 0.0, %v2477
        %v2479 = vpop.f32.mrf.mxu0
        %2480 = vdwg.mxu0
        %v2482 = vsel %vm1102, %v2230, 0
        %v2485 = vsel %vm2236, %v598, 0
        %2487 = vmatpush.bf16.msra.mxu0 0
        %2488 = vmatpush.bf16.msra.mxu0 0
        %2489 = vmatpush.bf16.msra.mxu0 0
        %2490 = vmatpush.bf16.msra.mxu0 0
        %2491 = vmatpush.bf16.msra.mxu0 0
        %2492 = vmatpush.bf16.msra.mxu0 0
        %2493 = vmatpush.bf16.msra.mxu0 0
        %2494 = vmatpush.bf16.msra.mxu0 %v2485
        %2495 = vmatmul.bf16.gmra.mxu0 %v2482
        %v2496 = vpop.f32.mrf.mxu0
        %v2497 = vadd.f32 0.0, %v2496
        %v2498 = vpop.f32.mrf.mxu0
        %2499 = vdwg.mxu0
        %v2501 = vsel %vm1102, %v2231, 0
        %v2504 = vsel %vm2236, %v599, 0
        %2506 = vmatpush.bf16.msra.mxu0 0
        %2507 = vmatpush.bf16.msra.mxu0 0
        %2508 = vmatpush.bf16.msra.mxu0 0
        %2509 = vmatpush.bf16.msra.mxu0 0
        %2510 = vmatpush.bf16.msra.mxu0 0
        %2511 = vmatpush.bf16.msra.mxu0 0
        %2512 = vmatpush.bf16.msra.mxu0 0
        %2513 = vmatpush.bf16.msra.mxu0 %v2504
        %2514 = vmatmul.bf16.gmra.mxu0 %v2501
        %v2515 = vpop.f32.mrf.mxu0
        %v2516 = vadd.f32 0.0, %v2515
        %v2517 = vpop.f32.mrf.mxu0
        %2518 = vdwg.mxu0
        %v2520 = vsel %vm1102, %v2232, 0
        %v2523 = vsel %vm2236, %v600, 0
        %2525 = vmatpush.bf16.msra.mxu0 0
        %2526 = vmatpush.bf16.msra.mxu0 0
        %2527 = vmatpush.bf16.msra.mxu0 0
        %2528 = vmatpush.bf16.msra.mxu0 0
        %2529 = vmatpush.bf16.msra.mxu0 0
        %2530 = vmatpush.bf16.msra.mxu0 0
        %2531 = vmatpush.bf16.msra.mxu0 0
        %2532 = vmatpush.bf16.msra.mxu0 %v2523
        %2533 = vmatmul.bf16.gmra.mxu0 %v2520
        %v2534 = vpop.f32.mrf.mxu0
        %v2535 = vadd.f32 0.0, %v2534
        %v2536 = vpop.f32.mrf.mxu0
        %2537 = vdwg.mxu0
        %v2554 = vmul.f32 %v2250, %v2117
        %v2555 = vmul.f32 %v2269, %v2120
        %v2556 = vmul.f32 %v2288, %v2123
        %v2557 = vmul.f32 %v2307, %v2126
        %v2558 = vmul.f32 %v2326, %v2129
        %v2559 = vmul.f32 %v2345, %v2132
        %v2560 = vmul.f32 %v2364, %v2135
        %v2561 = vmul.f32 %v2383, %v2138
        %v2562 = vmul.f32 %v2402, %v2141
        %v2563 = vmul.f32 %v2421, %v2144
        %v2564 = vmul.f32 %v2440, %v2147
        %v2565 = vmul.f32 %v2459, %v2150
        %v2566 = vmul.f32 %v2478, %v2153
        %v2567 = vmul.f32 %v2497, %v2156
        %v2568 = vmul.f32 %v2516, %v2159
        %v2569 = vmul.f32 %v2535, %v2162
        %v2570 = vpack.c.bf16 %v1738, %v1738
        %v2571 = vpack.c.bf16 %v1740, %v1740
        %v2572 = vpack.c.bf16 %v1742, %v1742
        %v2573 = vpack.c.bf16 %v1744, %v1744
        %v2574 = vpack.c.bf16 %v1746, %v1746
        %v2575 = vpack.c.bf16 %v1748, %v1748
        %v2576 = vpack.c.bf16 %v1750, %v1750
        %v2577 = vpack.c.bf16 %v1752, %v1752
        %v2578 = vpack.c.bf16 %v1754, %v1754
        %v2579 = vpack.c.bf16 %v1756, %v1756
        %v2580 = vpack.c.bf16 %v1758, %v1758
        %v2581 = vpack.c.bf16 %v1760, %v1760
        %v2582 = vpack.c.bf16 %v1762, %v1762
        %v2583 = vpack.c.bf16 %v1764, %v1764
        %v2584 = vpack.c.bf16 %v1766, %v1766
        %v2585 = vpack.c.bf16 %v1768, %v1768
        %v2588 = vunpack.c.l.b16 %v2570
        %v2589 = vunpack.c.l.b16 %v2571
        %v2590 = vpack.c.b16 %v2589, %v2588
        %v2593 = vunpack.c.l.b16 %v633
        %v2594 = vunpack.c.l.b16 %v634
        %v2595 = vpack.c.b16 %v2594, %v2593
        %v2598 = vsel %vm1151, %v2590, 0
        %2600 = vmatpush.bf16.msra.mxu0 0
        %2601 = vmatpush.bf16.msra.mxu0 0
        %2602 = vmatpush.bf16.msra.mxu0 0
        %2603 = vmatpush.bf16.msra.mxu0 0
        %2604 = vmatpush.bf16.msra.mxu0 0
        %2605 = vmatpush.bf16.msra.mxu0 0
        %2606 = vmatpush.bf16.msra.mxu0 0
        %2607 = vmatpush.bf16.msra.mxu0 %v2595
        %2608 = vmatmul.bf16.gmra.mxu0 %v2598
        %v2609 = vpop.f32.mrf.mxu0
        %v2610 = vadd.f32 0.0, %v2609
        %v2611 = vpop.f32.mrf.mxu0
        %v2612 = vadd.f32 0.0, %v2611
        %2613 = vdwg.mxu0
        %v2616 = vunpack.c.l.b16 %v2572
        %v2617 = vunpack.c.l.b16 %v2573
        %v2618 = vpack.c.b16 %v2617, %v2616
        %v2621 = vunpack.c.l.b16 %v635
        %v2622 = vunpack.c.l.b16 %v636
        %v2623 = vpack.c.b16 %v2622, %v2621
        %v2626 = vsel %vm1151, %v2618, 0
        %2628 = vmatpush.bf16.msra.mxu0 0
        %2629 = vmatpush.bf16.msra.mxu0 0
        %2630 = vmatpush.bf16.msra.mxu0 0
        %2631 = vmatpush.bf16.msra.mxu0 0
        %2632 = vmatpush.bf16.msra.mxu0 0
        %2633 = vmatpush.bf16.msra.mxu0 0
        %2634 = vmatpush.bf16.msra.mxu0 0
        %2635 = vmatpush.bf16.msra.mxu0 %v2623
        %2636 = vmatmul.bf16.gmra.mxu0 %v2626
        %v2637 = vpop.f32.mrf.mxu0
        %v2638 = vadd.f32 0.0, %v2637
        %v2639 = vpop.f32.mrf.mxu0
        %v2640 = vadd.f32 0.0, %v2639
        %2641 = vdwg.mxu0
        %v2644 = vunpack.c.l.b16 %v2574
        %v2645 = vunpack.c.l.b16 %v2575
        %v2646 = vpack.c.b16 %v2645, %v2644
        %v2649 = vunpack.c.l.b16 %v637
        %v2650 = vunpack.c.l.b16 %v638
        %v2651 = vpack.c.b16 %v2650, %v2649
        %v2654 = vsel %vm1151, %v2646, 0
        %2656 = vmatpush.bf16.msra.mxu0 0
        %2657 = vmatpush.bf16.msra.mxu0 0
        %2658 = vmatpush.bf16.msra.mxu0 0
        %2659 = vmatpush.bf16.msra.mxu0 0
        %2660 = vmatpush.bf16.msra.mxu0 0
        %2661 = vmatpush.bf16.msra.mxu0 0
        %2662 = vmatpush.bf16.msra.mxu0 0
        %2663 = vmatpush.bf16.msra.mxu0 %v2651
        %2664 = vmatmul.bf16.gmra.mxu0 %v2654
        %v2665 = vpop.f32.mrf.mxu0
        %v2666 = vadd.f32 0.0, %v2665
        %v2667 = vpop.f32.mrf.mxu0
        %v2668 = vadd.f32 0.0, %v2667
        %2669 = vdwg.mxu0
        %v2672 = vunpack.c.l.b16 %v2576
        %v2673 = vunpack.c.l.b16 %v2577
        %v2674 = vpack.c.b16 %v2673, %v2672
        %v2677 = vunpack.c.l.b16 %v639
        %v2678 = vunpack.c.l.b16 %v640
        %v2679 = vpack.c.b16 %v2678, %v2677
        %v2682 = vsel %vm1151, %v2674, 0
        %2684 = vmatpush.bf16.msra.mxu0 0
        %2685 = vmatpush.bf16.msra.mxu0 0
        %2686 = vmatpush.bf16.msra.mxu0 0
        %2687 = vmatpush.bf16.msra.mxu0 0
        %2688 = vmatpush.bf16.msra.mxu0 0
        %2689 = vmatpush.bf16.msra.mxu0 0
        %2690 = vmatpush.bf16.msra.mxu0 0
        %2691 = vmatpush.bf16.msra.mxu0 %v2679
        %2692 = vmatmul.bf16.gmra.mxu0 %v2682
        %v2693 = vpop.f32.mrf.mxu0
        %v2694 = vadd.f32 0.0, %v2693
        %v2695 = vpop.f32.mrf.mxu0
        %v2696 = vadd.f32 0.0, %v2695
        %2697 = vdwg.mxu0
        %v2700 = vunpack.c.l.b16 %v2578
        %v2701 = vunpack.c.l.b16 %v2579
        %v2702 = vpack.c.b16 %v2701, %v2700
        %v2705 = vunpack.c.l.b16 %v641
        %v2706 = vunpack.c.l.b16 %v642
        %v2707 = vpack.c.b16 %v2706, %v2705
        %v2710 = vsel %vm1151, %v2702, 0
        %2712 = vmatpush.bf16.msra.mxu0 0
        %2713 = vmatpush.bf16.msra.mxu0 0
        %2714 = vmatpush.bf16.msra.mxu0 0
        %2715 = vmatpush.bf16.msra.mxu0 0
        %2716 = vmatpush.bf16.msra.mxu0 0
        %2717 = vmatpush.bf16.msra.mxu0 0
        %2718 = vmatpush.bf16.msra.mxu0 0
        %2719 = vmatpush.bf16.msra.mxu0 %v2707
        %2720 = vmatmul.bf16.gmra.mxu0 %v2710
        %v2721 = vpop.f32.mrf.mxu0
        %v2722 = vadd.f32 0.0, %v2721
        %v2723 = vpop.f32.mrf.mxu0
        %v2724 = vadd.f32 0.0, %v2723
        %2725 = vdwg.mxu0
        %v2728 = vunpack.c.l.b16 %v2580
        %v2729 = vunpack.c.l.b16 %v2581
        %v2730 = vpack.c.b16 %v2729, %v2728
        %v2733 = vunpack.c.l.b16 %v643
        %v2734 = vunpack.c.l.b16 %v644
        %v2735 = vpack.c.b16 %v2734, %v2733
        %v2738 = vsel %vm1151, %v2730, 0
        %2740 = vmatpush.bf16.msra.mxu0 0
        %2741 = vmatpush.bf16.msra.mxu0 0
        %2742 = vmatpush.bf16.msra.mxu0 0
        %2743 = vmatpush.bf16.msra.mxu0 0
        %2744 = vmatpush.bf16.msra.mxu0 0
        %2745 = vmatpush.bf16.msra.mxu0 0
        %2746 = vmatpush.bf16.msra.mxu0 0
        %2747 = vmatpush.bf16.msra.mxu0 %v2735
        %2748 = vmatmul.bf16.gmra.mxu0 %v2738
        %v2749 = vpop.f32.mrf.mxu0
        %v2750 = vadd.f32 0.0, %v2749
        %v2751 = vpop.f32.mrf.mxu0
        %v2752 = vadd.f32 0.0, %v2751
        %2753 = vdwg.mxu0
        %v2756 = vunpack.c.l.b16 %v2582
        %v2757 = vunpack.c.l.b16 %v2583
        %v2758 = vpack.c.b16 %v2757, %v2756
        %v2761 = vunpack.c.l.b16 %v645
        %v2762 = vunpack.c.l.b16 %v646
        %v2763 = vpack.c.b16 %v2762, %v2761
        %v2766 = vsel %vm1151, %v2758, 0
        %2768 = vmatpush.bf16.msra.mxu0 0
        %2769 = vmatpush.bf16.msra.mxu0 0
        %2770 = vmatpush.bf16.msra.mxu0 0
        %2771 = vmatpush.bf16.msra.mxu0 0
        %2772 = vmatpush.bf16.msra.mxu0 0
        %2773 = vmatpush.bf16.msra.mxu0 0
        %2774 = vmatpush.bf16.msra.mxu0 0
        %2775 = vmatpush.bf16.msra.mxu0 %v2763
        %2776 = vmatmul.bf16.gmra.mxu0 %v2766
        %v2777 = vpop.f32.mrf.mxu0
        %v2778 = vadd.f32 0.0, %v2777
        %v2779 = vpop.f32.mrf.mxu0
        %v2780 = vadd.f32 0.0, %v2779
        %2781 = vdwg.mxu0
        %v2784 = vunpack.c.l.b16 %v2584
        %v2785 = vunpack.c.l.b16 %v2585
        %v2786 = vpack.c.b16 %v2785, %v2784
        %v2789 = vunpack.c.l.b16 %v647
        %v2790 = vunpack.c.l.b16 %v648
        %v2791 = vpack.c.b16 %v2790, %v2789
        %v2794 = vsel %vm1151, %v2786, 0
        %2796 = vmatpush.bf16.msra.mxu0 0
        %2797 = vmatpush.bf16.msra.mxu0 0
        %2798 = vmatpush.bf16.msra.mxu0 0
        %2799 = vmatpush.bf16.msra.mxu0 0
        %2800 = vmatpush.bf16.msra.mxu0 0
        %2801 = vmatpush.bf16.msra.mxu0 0
        %2802 = vmatpush.bf16.msra.mxu0 0
        %2803 = vmatpush.bf16.msra.mxu0 %v2791
        %2804 = vmatmul.bf16.gmra.mxu0 %v2794
        %v2805 = vpop.f32.mrf.mxu0
        %v2806 = vadd.f32 0.0, %v2805
        %v2807 = vpop.f32.mrf.mxu0
        %v2808 = vadd.f32 0.0, %v2807
        %2809 = vdwg.mxu0
        %v2810 = vperm.slane %v2215, 0
        %v2811 = vlaneseq
        %v2812 = vshrl.u32 %v2811, 7
        %2814 = vset.pattern.permute.xlu0 %v2812
        %2815 = vperm.xlu0 %2814, %v2810
        %v2816 = vpop.permute.xlu0 %2815
        %v2817 = vlaneseq
        %v2818 = vshrl.u32 %v2817, 7
        %v2819 = vadd.s32 %v2818, 8
        %2820 = vset.pattern.permute.xlu0 %v2819
        %2821 = vperm.xlu0 %2820, %v2810
        %v2822 = vpop.permute.xlu0 %2821
        %v2823 = vperm.slane %v2215, 1
        %v2824 = vlaneseq
        %v2825 = vshrl.u32 %v2824, 7
        %2827 = vset.pattern.permute.xlu0 %v2825
        %2828 = vperm.xlu0 %2827, %v2823
        %v2829 = vpop.permute.xlu0 %2828
        %v2830 = vlaneseq
        %v2831 = vshrl.u32 %v2830, 7
        %v2832 = vadd.s32 %v2831, 8
        %2833 = vset.pattern.permute.xlu0 %v2832
        %2834 = vperm.xlu0 %2833, %v2823
        %v2835 = vpop.permute.xlu0 %2834
        %v2836 = vperm.slane %v2215, 2
        %v2837 = vlaneseq
        %v2838 = vshrl.u32 %v2837, 7
        %2840 = vset.pattern.permute.xlu0 %v2838
        %2841 = vperm.xlu0 %2840, %v2836
        %v2842 = vpop.permute.xlu0 %2841
        %v2843 = vlaneseq
        %v2844 = vshrl.u32 %v2843, 7
        %v2845 = vadd.s32 %v2844, 8
        %2846 = vset.pattern.permute.xlu0 %v2845
        %2847 = vperm.xlu0 %2846, %v2836
        %v2848 = vpop.permute.xlu0 %2847
        %v2849 = vperm.slane %v2215, 3
        %v2850 = vlaneseq
        %v2851 = vshrl.u32 %v2850, 7
        %2853 = vset.pattern.permute.xlu0 %v2851
        %2854 = vperm.xlu0 %2853, %v2849
        %v2855 = vpop.permute.xlu0 %2854
        %v2856 = vlaneseq
        %v2857 = vshrl.u32 %v2856, 7
        %v2858 = vadd.s32 %v2857, 8
        %2859 = vset.pattern.permute.xlu0 %v2858
        %2860 = vperm.xlu0 %2859, %v2849
        %v2861 = vpop.permute.xlu0 %2860
        %v2862 = vperm.slane %v2215, 4
        %v2863 = vlaneseq
        %v2864 = vshrl.u32 %v2863, 7
        %2866 = vset.pattern.permute.xlu0 %v2864
        %2867 = vperm.xlu0 %2866, %v2862
        %v2868 = vpop.permute.xlu0 %2867
        %v2869 = vlaneseq
        %v2870 = vshrl.u32 %v2869, 7
        %v2871 = vadd.s32 %v2870, 8
        %2872 = vset.pattern.permute.xlu0 %v2871
        %2873 = vperm.xlu0 %2872, %v2862
        %v2874 = vpop.permute.xlu0 %2873
        %v2875 = vperm.slane %v2215, 5
        %v2876 = vlaneseq
        %v2877 = vshrl.u32 %v2876, 7
        %2879 = vset.pattern.permute.xlu0 %v2877
        %2880 = vperm.xlu0 %2879, %v2875
        %v2881 = vpop.permute.xlu0 %2880
        %v2882 = vlaneseq
        %v2883 = vshrl.u32 %v2882, 7
        %v2884 = vadd.s32 %v2883, 8
        %2885 = vset.pattern.permute.xlu0 %v2884
        %2886 = vperm.xlu0 %2885, %v2875
        %v2887 = vpop.permute.xlu0 %2886
        %v2888 = vperm.slane %v2215, 6
        %v2889 = vlaneseq
        %v2890 = vshrl.u32 %v2889, 7
        %2892 = vset.pattern.permute.xlu0 %v2890
        %2893 = vperm.xlu0 %2892, %v2888
        %v2894 = vpop.permute.xlu0 %2893
        %v2895 = vlaneseq
        %v2896 = vshrl.u32 %v2895, 7
        %v2897 = vadd.s32 %v2896, 8
        %2898 = vset.pattern.permute.xlu0 %v2897
        %2899 = vperm.xlu0 %2898, %v2888
        %v2900 = vpop.permute.xlu0 %2899
        %v2901 = vperm.slane %v2215, 7
        %v2902 = vlaneseq
        %v2903 = vshrl.u32 %v2902, 7
        %2905 = vset.pattern.permute.xlu0 %v2903
        %2906 = vperm.xlu0 %2905, %v2901
        %v2907 = vpop.permute.xlu0 %2906
        %v2908 = vlaneseq
        %v2909 = vshrl.u32 %v2908, 7
        %v2910 = vadd.s32 %v2909, 8
        %2911 = vset.pattern.permute.xlu0 %v2910
        %2912 = vperm.xlu0 %2911, %v2901
        %v2913 = vpop.permute.xlu0 %2912
        %v2914 = vmul.f32 %v2610, %v2816
        %v2915 = vmul.f32 %v2612, %v2822
        %v2916 = vmul.f32 %v2638, %v2829
        %v2917 = vmul.f32 %v2640, %v2835
        %v2918 = vmul.f32 %v2666, %v2842
        %v2919 = vmul.f32 %v2668, %v2848
        %v2920 = vmul.f32 %v2694, %v2855
        %v2921 = vmul.f32 %v2696, %v2861
        %v2922 = vmul.f32 %v2722, %v2868
        %v2923 = vmul.f32 %v2724, %v2874
        %v2924 = vmul.f32 %v2750, %v2881
        %v2925 = vmul.f32 %v2752, %v2887
        %v2926 = vmul.f32 %v2778, %v2894
        %v2927 = vmul.f32 %v2780, %v2900
        %v2928 = vmul.f32 %v2806, %v2907
        %v2929 = vmul.f32 %v2808, %v2913
        %v2930 = vpack.c.bf16 %v2554, %v2554
        %v2931 = vpack.c.bf16 %v2555, %v2555
        %v2932 = vpack.c.bf16 %v2556, %v2556
        %v2933 = vpack.c.bf16 %v2557, %v2557
        %v2934 = vpack.c.bf16 %v2558, %v2558
        %v2935 = vpack.c.bf16 %v2559, %v2559
        %v2936 = vpack.c.bf16 %v2560, %v2560
        %v2937 = vpack.c.bf16 %v2561, %v2561
        %v2938 = vpack.c.bf16 %v2562, %v2562
        %v2939 = vpack.c.bf16 %v2563, %v2563
        %v2940 = vpack.c.bf16 %v2564, %v2564
        %v2941 = vpack.c.bf16 %v2565, %v2565
        %v2942 = vpack.c.bf16 %v2566, %v2566
        %v2943 = vpack.c.bf16 %v2567, %v2567
        %v2944 = vpack.c.bf16 %v2568, %v2568
        %v2945 = vpack.c.bf16 %v2569, %v2569
        %2946 = vst [vmem:[%s538] sm:$0xf] %v2930
        %2947 = vst [vmem:[%s538 + $0x4] sm:$0xf] %v2931
        %2948 = vst [vmem:[%s538 + $0x8] sm:$0xf] %v2932
        %2949 = vst [vmem:[%s538 + $0xc] sm:$0xf] %v2933
        %2950 = vst [vmem:[%s538 + $0x10] sm:$0xf] %v2934
        %2951 = vst [vmem:[%s538 + $0x14] sm:$0xf] %v2935
        %2952 = vst [vmem:[%s538 + $0x18] sm:$0xf] %v2936
        %2953 = vst [vmem:[%s538 + $0x1c] sm:$0xf] %v2937
        %2954 = vst [vmem:[%s538 + $0x20] sm:$0xf] %v2938
        %2955 = vst [vmem:[%s538 + $0x24] sm:$0xf] %v2939
        %2956 = vst [vmem:[%s538 + $0x28] sm:$0xf] %v2940
        %2957 = vst [vmem:[%s538 + $0x2c] sm:$0xf] %v2941
        %2958 = vst [vmem:[%s538 + $0x30] sm:$0xf] %v2942
        %2959 = vst [vmem:[%s538 + $0x34] sm:$0xf] %v2943
        %2960 = vst [vmem:[%s538 + $0x38] sm:$0xf] %v2944
        %2961 = vst [vmem:[%s538 + $0x3c] sm:$0xf] %v2945
        %v2962 = vpack.c.bf16 %v2914, %v2914
        %v2963 = vpack.c.bf16 %v2915, %v2915
        %v2964 = vpack.c.bf16 %v2916, %v2916
        %v2965 = vpack.c.bf16 %v2917, %v2917
        %v2966 = vpack.c.bf16 %v2918, %v2918
        %v2967 = vpack.c.bf16 %v2919, %v2919
        %v2968 = vpack.c.bf16 %v2920, %v2920
        %v2969 = vpack.c.bf16 %v2921, %v2921
        %v2970 = vpack.c.bf16 %v2922, %v2922
        %v2971 = vpack.c.bf16 %v2923, %v2923
        %v2972 = vpack.c.bf16 %v2924, %v2924
        %v2973 = vpack.c.bf16 %v2925, %v2925
        %v2974 = vpack.c.bf16 %v2926, %v2926
        %v2975 = vpack.c.bf16 %v2927, %v2927
        %v2976 = vpack.c.bf16 %v2928, %v2928
        %v2977 = vpack.c.bf16 %v2929, %v2929
        %2978 = vst [vmem:[%s545] sm:$0xf] %v2962
        %2979 = vst [vmem:[%s545 + $0x4] sm:$0xf] %v2963
        %2980 = vst [vmem:[%s545 + $0x8] sm:$0xf] %v2964
        %2981 = vst [vmem:[%s545 + $0xc] sm:$0xf] %v2965
        %2982 = vst [vmem:[%s545 + $0x10] sm:$0xf] %v2966
        %2983 = vst [vmem:[%s545 + $0x14] sm:$0xf] %v2967
        %2984 = vst [vmem:[%s545 + $0x18] sm:$0xf] %v2968
        %2985 = vst [vmem:[%s545 + $0x1c] sm:$0xf] %v2969
        %2986 = vst [vmem:[%s545 + $0x20] sm:$0xf] %v2970
        %2987 = vst [vmem:[%s545 + $0x24] sm:$0xf] %v2971
        %2988 = vst [vmem:[%s545 + $0x28] sm:$0xf] %v2972
        %2989 = vst [vmem:[%s545 + $0x2c] sm:$0xf] %v2973
        %2990 = vst [vmem:[%s545 + $0x30] sm:$0xf] %v2974
        %2991 = vst [vmem:[%s545 + $0x34] sm:$0xf] %v2975
        %2992 = vst [vmem:[%s545 + $0x38] sm:$0xf] %v2976
        %2993 = vst [vmem:[%s545 + $0x3c] sm:$0xf] %v2977
        %s2994 = sand.u32 %s223, 1
        %s2995 = scalar_lea.sflag [#allocation4], %s2994
        %s2996 = sand.u32 %s223, 1
        %s2997 = smul.addr %s2996, 64
        %s2998 = scalar_lea.vmem [#allocation13], %s2997
        %s2999 = sand.u32 %s251, 1
        %s3000 = scalar_lea.sflag [#allocation15], %s2999
        %s3001 = sand.u32 %s251, 1
        %s3002 = smul.addr %s3001, 64
        %s3003 = scalar_lea.vmem [#allocation14], %s3002
        // Predicated region
        $region69: #{tpu_custom_call.1} parent=43 // pred_check
          %p3004 = pneg %p233
        $region70: #{tpu_custom_call.1} parent=43 // pred_check_branch
          %3006 = sbr.rel (%p3004) target = $region72
        $region71: #{tpu_custom_call.1} parent=43 // pred_region
          %s3007 = smul.u32 16, %s42
          %3009 = vsyncadd %s2995, 0
          %s3010 = smul.addr %s41, 16
          %s3011 = sadd.s32 %s3007, %s3010
          %s3012 = smul.addr %s3011, 4
          %s3013 = scalar_lea.hbm %s6, %s3012
          %s3014 = sshll.u32 %s2998, 4
          %s3015 = int_to_ptr.vmem [resolvable:$true] %s3014
          %s3016 = sshll.u32 %s3013, 4
          %s3017 = int_to_ptr.hbm [resolvable:$true] %s3016
          %3022 = dma.vmem_to_hbm [thread:$0]  %s3015, 1024, %s3017, %s2995, 64, 64, 4
        $region72: #{tpu_custom_call.1} parent=43 // pred_fallthru
          _
        // Predicated region
        $region73: #{tpu_custom_call.1} parent=43 // pred_check
          %p3023 = pneg %p261
        $region74: #{tpu_custom_call.1} parent=43 // pred_check_branch
          %3025 = sbr.rel (%p3023) target = $region76
        $region75: #{tpu_custom_call.1} parent=43 // pred_region
          %s3026 = smul.u32 2, %s42
          %3028 = vsyncadd %s3000, 0
          %s3029 = smul.addr %s41, 16
          %s3030 = sadd.s32 %s3026, %s3029
          %s3031 = smul.addr %s3030, 4
          %s3032 = scalar_lea.hbm %s7, %s3031
          %s3033 = sshll.u32 %s3003, 4
          %s3034 = int_to_ptr.vmem [resolvable:$true] %s3033
          %s3035 = sshll.u32 %s3032, 4
          %s3036 = int_to_ptr.hbm [resolvable:$true] %s3035
          %3041 = dma.vmem_to_hbm [thread:$0]  %s3034, 1024, %s3036, %s3000, 64, 64, 4
        $region76: #{tpu_custom_call.1} parent=43 // pred_fallthru
          _
      $region44: #{tpu_custom_call.1} parent=5 // pred_fallthru
        _
      %p3042 = scmp.le.s32.totalorder 2, %s32
      // Predicated region
      $region77: #{tpu_custom_call.1} parent=5 // pred_check
        %p3043 = pneg %p3042
      $region78: #{tpu_custom_call.1} parent=5 // pred_check_branch
        %3045 = sbr.rel (%p3043) target = $region80
      $region79: #{tpu_custom_call.1} parent=5 // pred_region
        %s3046 = ssub.s32 %s32, 2
        // Predicated region
        $region81: #{tpu_custom_call.1} parent=79 // pred_check
          %p3047 = pneg %p239
        $region82: #{tpu_custom_call.1} parent=79 // pred_check_branch
          %3049 = sbr.rel (%p3047) target = $region84
        $region83: #{tpu_custom_call.1} parent=79 // pred_region
          %s3050 = sand.u32 %s224, 1
          %s3051 = scalar_lea.sflag [#allocation4], %s3050
          %s3052 = sand.u32 %s224, 1
          %s3053 = smul.addr %s3052, 64
          %s3054 = scalar_lea.vmem [#allocation13], %s3053
          %3056 = dma.done %s3051, 1024
        $region84: #{tpu_custom_call.1} parent=79 // pred_fallthru
          _
        // Predicated region
        $region85: #{tpu_custom_call.1} parent=79 // pred_check
          %p3057 = pneg %p267
        $region86: #{tpu_custom_call.1} parent=79 // pred_check_branch
          %3059 = sbr.rel (%p3057) target = $region88
        $region87: #{tpu_custom_call.1} parent=79 // pred_region
          %s3060 = sand.u32 %s252, 1
          %s3061 = scalar_lea.sflag [#allocation15], %s3060
          %s3062 = sand.u32 %s252, 1
          %s3063 = smul.addr %s3062, 64
          %s3064 = scalar_lea.vmem [#allocation14], %s3063
          %3066 = dma.done %s3061, 1024
        $region88: #{tpu_custom_call.1} parent=79 // pred_fallthru
          _
      $region80: #{tpu_custom_call.1} parent=5 // pred_fallthru
        _
    $region6: #{tpu_custom_call.1} parent=1 // loop_footer
      %s36 = sadd.s32 1, %s32
    $region7: #{tpu_custom_call.1} parent=1 // loop_footer_branch
      %31 = sbr.rel target = $region3
    $region8: #{tpu_custom_call.1} parent=1 // loop_exit
      _
    %3067 = vsyncpa [#allocation3], 1
    %s3068 = scalar_lea.sflag [#allocation3], 1
    %3069 = vsyncpa %s3068, 1
    %3070 = vsyncpa [#allocation6], 1
    %s3071 = scalar_lea.sflag [#allocation6], 1
    %3072 = vsyncpa %s3071, 1
    %3073 = vsyncpa [#allocation9], 1
    %s3074 = scalar_lea.sflag [#allocation9], 1
    %3075 = vsyncpa %s3074, 1
    %3076 = vsyncpa [#allocation12], 1
    %s3077 = scalar_lea.sflag [#allocation12], 1
    %3078 = vsyncpa %s3077, 1
    %3079 = vsyncpa [#allocation4], 1
    %s3080 = scalar_lea.sflag [#allocation4], 1
    %3081 = vsyncpa %s3080, 1
    %3082 = vsyncpa [#allocation15], 1
    %s3083 = scalar_lea.sflag [#allocation15], 1
    %3084 = vsyncpa %s3083, 1

</llo_original>
